<compile_context>
chip_gen: v6e
topology: v6e:2x2x1
jax: 0.10.0
libtpu: 0.0.40
codegen_flags: <defaults>
</compile_context>

<pallas_src>
import jax
import jax.numpy as jnp
from jax.experimental import pallas as pl
from jax.experimental.pallas import tpu as pltpu

IN_FEATURES = 440
OUT_FEATURES = 1000
K_PAD = 512    # 440 -> 512  (multiple of 128, aligned contraction rows)
N_PAD = 1024   # 1000 -> 1024 (multiple of 128, enables clean 2x512 N-split)


def _linear_kernel(x_ref, w_ref, b_ref, o_ref):
    # x_ref: (B, Kp)   f32   (zero-padded activations)
    # w_ref: (Kp, TN)  bf16  (pre-transposed, pre-padded weight tile)
    # b_ref: (1, TN)   f32
    # o_ref: (B, TN)   f32
    x_bf = x_ref[...].astype(w_ref.dtype)
    acc = jnp.dot(x_bf, w_ref[...], preferred_element_type=jnp.float32)
    o_ref[...] = acc + b_ref[...]


def prepare_params(weight, bias):
    """One-time (init) parameter prep: transpose, pad, cast to bf16."""
    N, K = weight.shape
    w_kn = weight.T                                         # (K, N) once, at init
    w_kn = jnp.pad(w_kn, ((0, K_PAD - K), (0, N_PAD - N)))  # (Kp, Np)
    w_kn = w_kn.astype(jnp.bfloat16)                        # halve weight HBM bytes
    b_1n = jnp.pad(bias.astype(jnp.float32), (0, N_PAD - N)).reshape(1, N_PAD)
    return w_kn, b_1n


def linear_pallas(x_flat_padded, w_kn, b_1n, n_splits):
    """x_flat_padded: (B, Kp) f32, w_kn: (Kp, Np) bf16, b_1n: (1, Np) f32."""
    B, Kp = x_flat_padded.shape
    Kp2, Np = w_kn.shape
    assert Kp == Kp2 and Np % n_splits == 0
    TN = Np // n_splits

    cost = pl.CostEstimate(
        flops=2 * B * Kp * Np,
        bytes_accessed=Kp * Np * 2 + B * Kp * 4 + Np * 4 + B * Np * 4,
        transcendentals=0,
    )

    return pl.pallas_call(
        _linear_kernel,
        out_shape=jax.ShapeDtypeStruct((B, Np), jnp.float32),
        grid=(n_splits,),
        in_specs=[
            pl.BlockSpec((B, Kp), lambda i: (0, 0)),   # activations (whole)
            pl.BlockSpec((Kp, TN), lambda i: (0, i)),  # weight N-slice
            pl.BlockSpec((1, TN), lambda i: (0, i)),   # bias N-slice
        ],
        out_specs=pl.BlockSpec((B, TN), lambda i: (0, i)),
        compiler_params=pltpu.CompilerParams(
            dimension_semantics=("parallel",),
        ),
        cost_estimate=cost,
    )(x_flat_padded, w_kn, b_1n)


def forward(x_nchw, w_kn, b_1n, n_splits):
    # flatten(start_dim=1): (N, C, H, W) -> (N, C*H*W); H=W=1 so pure reshape.
    B = x_nchw.shape[0]
    x_flat = x_nchw.reshape(B, -1).astype(jnp.float32)
    K = x_flat.shape[1]
    Kp = w_kn.shape[0]
    if Kp > K:  # zero-pad contraction dim (zeros contribute nothing to the dot)
        x_flat = jnp.pad(x_flat, ((0, 0), (0, Kp - K)))
    out_padded = linear_pallas(x_flat, w_kn, b_1n, n_splits)
    return out_padded[:, :OUT_FEATURES]


def _num_n_splits():
    # Split N across the 2 TensorCores only on v7x-class chips; keep the
    # single-block grid on 1-TC chips (v5e/v6e).
    try:
        kind = jax.devices()[0].device_kind.lower()
    except Exception:
        return 1
    return 2 if "v7" in kind else 1


if __name__ == "__main__":
    key = jax.random.PRNGKey(0)
    k_x, k_w, k_b = jax.random.split(key, 3)

    # Input matches the module: torch.randn([1, 440, 1, 1])
    x = jax.random.normal(k_x, (1, IN_FEATURES, 1, 1), dtype=jnp.float32)

    # Deterministic synthetic parameters (PyTorch Linear layout: (out, in))
    bound = 1.0 / (IN_FEATURES ** 0.5)
    weight = jax.random.uniform(
        k_w, (OUT_FEATURES, IN_FEATURES), dtype=jnp.float32,
        minval=-bound, maxval=bound)
    bias = jax.random.uniform(
        k_b, (OUT_FEATURES,), dtype=jnp.float32, minval=-bound, maxval=bound)

    # One-time parameter preparation (transpose + pad + bf16 cast).
    w_kn, b_1n = prepare_params(weight, bias)
    n_splits = _num_n_splits()

    out = forward(x, w_kn, b_1n, n_splits)
    out = jax.block_until_ready(out)

    # Sanity check against plain f32 JAX reference (tolerance loosened because
    # the weight is streamed as bf16; accumulation is f32).
    ref = x.reshape(1, -1) @ weight.T + bias
    assert out.shape == (1, OUT_FEATURES)
    assert jnp.allclose(out, ref, atol=3e-2, rtol=3e-2), (
        float(jnp.max(jnp.abs(out - ref))))

    print("KERNEL_OK")
</pallas_src>

<mosaic_0001>
module attributes {stable_mosaic.version = 11 : i64} {
  func.func @_linear_kernel(%arg0: i32, %arg1: memref<1x512xf32, #tpu.memory_space<vmem>>, %arg2: memref<512x1024xbf16, #tpu.memory_space<vmem>>, %arg3: memref<1x1024xf32, #tpu.memory_space<vmem>>, %arg4: memref<1x1024xf32, #tpu.memory_space<vmem>>) attributes {dimension_semantics = [#tpu.dimension_semantics<parallel>], iteration_bounds = array<i64: 1>, scalar_prefetch = 0 : i64, scratch_operands = 0 : i64, tpu.core_type = #tpu.core_type<tc>, window_params = [{pipeline_mode = #tpu.pipeline_mode<synchronous>, transform_indices = @transform_0, window_bounds = array<i64: 1, 512>}, {transform_indices = @transform_1, window_bounds = array<i64: 512, 1024>}, {transform_indices = @transform_2, window_bounds = array<i64: 1, 1024>}, {transform_indices = @transform_3, window_bounds = array<i64: 1, 1024>}]} {
    %c0 = arith.constant 0 : index
    %c0_0 = arith.constant 0 : index
    %0 = vector.load %arg1[%c0, %c0_0] : memref<1x512xf32, #tpu.memory_space<vmem>>, vector<1x512xf32>
    %1 = arith.truncf %0 : vector<1x512xf32> to vector<1x512xbf16>
    %c0_1 = arith.constant 0 : index
    %c0_2 = arith.constant 0 : index
    %2 = vector.load %arg2[%c0_1, %c0_2] : memref<512x1024xbf16, #tpu.memory_space<vmem>>, vector<512x1024xbf16>
    %cst = arith.constant dense<0.000000e+00> : vector<1x1024xf32>
    %3 = tpu.matmul %1, %2, %cst {dimension_numbers = #tpu.dot_dimension_numbers<[1], [0], [0], [1], [0, 0, 1, 1], [], []>} : vector<1x512xbf16>, vector<512x1024xbf16>, vector<1x1024xf32> -> vector<1x1024xf32>
    %c0_3 = arith.constant 0 : index
    %c0_4 = arith.constant 0 : index
    %4 = vector.load %arg3[%c0_3, %c0_4] : memref<1x1024xf32, #tpu.memory_space<vmem>>, vector<1x1024xf32>
    %5 = arith.addf %3, %4 : vector<1x1024xf32>
    %c0_5 = arith.constant 0 : index
    %c0_6 = arith.constant 0 : index
    %6 = vector.load %arg4[%c0_5, %c0_6] : memref<1x1024xf32, #tpu.memory_space<vmem>>, vector<1x1024xf32>
    tpu.vector_store %arg4[%c0_5, %c0_6], %5 {strides = array<i32>} : memref<1x1024xf32, #tpu.memory_space<vmem>>, vector<1x1024xf32>,
    return
  }
  func.func @transform_0(%arg0: i32) -> (i32, i32) {
    %c0_i32 = arith.constant 0 : i32
    %c0_i32_0 = arith.constant 0 : i32
    %c0_i32_1 = arith.constant 0 : i32
    return %c0_i32, %c0_i32_0 : i32, i32
  }
  func.func @transform_1(%arg0: i32) -> (i32, i32) {
    %c0_i32 = arith.constant 0 : i32
    %c0_i32_0 = arith.constant 0 : i32
    return %c0_i32, %arg0 : i32, i32
  }
  func.func @transform_2(%arg0: i32) -> (i32, i32) {
    %c0_i32 = arith.constant 0 : i32
    %c0_i32_0 = arith.constant 0 : i32
    return %c0_i32, %arg0 : i32, i32
  }
  func.func @transform_3(%arg0: i32) -> (i32, i32) {
    %c0_i32 = arith.constant 0 : i32
    %c0_i32_0 = arith.constant 0 : i32
    return %c0_i32, %arg0 : i32, i32
  }
}

</mosaic_0001>

<llo_original>
// kernel: tpu_custom_call.1
$region0: #{tpu_custom_call.1}
  #allocation0 [shape = 'u32[]', space=smem, size = 0x4, offset = 0x4, fixed_abs, tag = 'smem constant byte address 0x4 - core index']
  #allocation1 [shape = 'u32[144,128]{1,0:T(1,128)}', space=vmem, size = 0x12000, scoped, tag = 'internal scratch']
  %s0 = inlined_call_operand.hbm [shape: f32[1,512], index: 0, kind: input, shape index: {}]
  %s1 = inlined_call_operand.hbm [shape: bf16[512,1024], index: 1, kind: input, shape index: {}]
  %s2 = inlined_call_operand.hbm [shape: f32[1,1024], index: 2, kind: input, shape index: {}]
  %s3 = inlined_call_operand.hbm [shape: f32[1,1024], index: 3, kind: output, shape index: {}]
  %s4 = sld [smem:[#allocation0]]
  $region34: #{tpu_custom_call.1} parent=0
    _
  %s6 = ssub.s32 1, %s4
  %s7 = scalar_select 0, %s6, %s4
  $region1: #{tpu_custom_call.1} parent=0
    #allocation2 [shape = 'u8[2048]{0}', space=vmem, size = 0x800, scoped, tag = 'input window, operand 0, single buffered']
    #allocation3 [shape = 's32[1]{0}', space=sflag, size = 0x4, scoped, tag = 'scoped memory for tpu_custom_call.1']
    #allocation4 [shape = 's32[1]{0}', space=sflag, size = 0x4, scoped, tag = 'scoped memory for tpu_custom_call.1']
    #allocation5 [shape = 'u8[1048576]{0}', space=vmem, size = 0x100000, scoped, tag = 'input window, operand 1, single buffered']
    #allocation6 [shape = 's32[1]{0}', space=sflag, size = 0x4, scoped, tag = 'scoped memory for tpu_custom_call.1']
    #allocation7 [shape = 'u8[4096]{0}', space=vmem, size = 0x1000, scoped, tag = 'input window, operand 2, single buffered']
    #allocation8 [shape = 'u8[4096]{0}', space=vmem, size = 0x1000, scoped, tag = 'output window, operand 0, single buffered']
    %8 = vsyncpa [#allocation3], 0
    %9 = vsyncpa [#allocation6], 0
    %10 = vsyncpa [#allocation4], 0
    // Predicated region
    $region2: #{tpu_custom_call.1} parent=1 // pred_check
      _
    $region3: #{tpu_custom_call.1} parent=1 // pred_check_branch
      %12 = sbr.rel (0) target = $region5
    $region4: #{tpu_custom_call.1} parent=1 // pred_region
      %s14 = ssub.s32 64, 64
      %15 = vsyncadd [#allocation3], %s14
      %s17 = sshll.u32 [#allocation2], 4
      %s18 = int_to_ptr.vmem [resolvable:$true] %s17
      %20 = dma.hbm_to_vmem [thread:$0]  %s0, 64, %s18, [#allocation3]
    $region5: #{tpu_custom_call.1} parent=1 // pred_fallthru
      _
    // Predicated region
    $region6: #{tpu_custom_call.1} parent=1 // pred_check
      _
    $region7: #{tpu_custom_call.1} parent=1 // pred_check_branch
      %22 = sbr.rel (0) target = $region9
    $region8: #{tpu_custom_call.1} parent=1 // pred_region
      %s24 = ssub.s32 32768, 32768
      %25 = vsyncadd [#allocation6], %s24
      %s26 = sshll.u32 [#allocation5], 4
      %s27 = int_to_ptr.vmem [resolvable:$true] %s26
      %32 = dma.hbm_to_vmem [thread:$0]  %s1, 32768, %s27, [#allocation6], 512, 512, 32
    $region9: #{tpu_custom_call.1} parent=1 // pred_fallthru
      _
    // Predicated region
    $region10: #{tpu_custom_call.1} parent=1 // pred_check
      _
    $region11: #{tpu_custom_call.1} parent=1 // pred_check_branch
      %34 = sbr.rel (0) target = $region13
    $region12: #{tpu_custom_call.1} parent=1 // pred_region
      %s36 = ssub.s32 128, 128
      %37 = vsyncadd [#allocation6], %s36
      %s39 = sshll.u32 [#allocation7], 4
      %s40 = int_to_ptr.vmem [resolvable:$true] %s39
      %42 = dma.hbm_to_vmem [thread:$0]  %s2, 128, %s40, [#allocation6]
    $region13: #{tpu_custom_call.1} parent=1 // pred_fallthru
      _
    // Predicated region
    $region14: #{tpu_custom_call.1} parent=1 // pred_check
      _
    $region15: #{tpu_custom_call.1} parent=1 // pred_check_branch
      %44 = sbr.rel (0) target = $region17
    $region16: #{tpu_custom_call.1} parent=1 // pred_region
      %45 = dma.done [#allocation3], 64
    $region17: #{tpu_custom_call.1} parent=1 // pred_fallthru
      _
    // Predicated region
    $region18: #{tpu_custom_call.1} parent=1 // pred_check
      _
    $region19: #{tpu_custom_call.1} parent=1 // pred_check_branch
      %47 = sbr.rel (0) target = $region21
    $region20: #{tpu_custom_call.1} parent=1 // pred_region
      %48 = dma.done [#allocation6], 32768
    $region21: #{tpu_custom_call.1} parent=1 // pred_fallthru
      _
    // Predicated region
    $region22: #{tpu_custom_call.1} parent=1 // pred_check
      _
    $region23: #{tpu_custom_call.1} parent=1 // pred_check_branch
      %50 = sbr.rel (0) target = $region25
    $region24: #{tpu_custom_call.1} parent=1 // pred_region
      %51 = dma.done [#allocation6], 128
    $region25: #{tpu_custom_call.1} parent=1 // pred_fallthru
      _
    %v52 = vld [vmem:[#allocation2] sm:$0xf]
    %v54 = vlaneseq
    %v55 = vshrl.u32 %v54, 7
    %v56 = vsub.s32 0, %v55
    %v57 = vrot.slane %v52, %v56
    %v58 = vlaneseq
    %v59 = vshrl.u32 %v58, 7
    %v60 = vsub.s32 1, %v59
    %v61 = vrot.slane %v52, %v60
    %v62 = vlaneseq
    %v63 = vshrl.u32 %v62, 7
    %v64 = vsub.s32 2, %v63
    %v65 = vrot.slane %v52, %v64
    %v66 = vlaneseq
    %v67 = vshrl.u32 %v66, 7
    %v68 = vsub.s32 3, %v67
    %v69 = vrot.slane %v52, %v68
    %v74 = vpack.c.bf16 %v57, %v57
    %v75 = vpack.c.bf16 %v61, %v61
    %v76 = vpack.c.bf16 %v65, %v65
    %v77 = vpack.c.bf16 %v69, %v69
    %v78 = vld [vmem:[#allocation5] sm:$0xff]
    %v79 = vld [vmem:[#allocation5 + $0x8] sm:$0xff]
    %v80 = vld [vmem:[#allocation5 + $0x10] sm:$0xff]
    %v81 = vld [vmem:[#allocation5 + $0x18] sm:$0xff]
    %v82 = vld [vmem:[#allocation5 + $0x20] sm:$0xff]
    %v83 = vld [vmem:[#allocation5 + $0x28] sm:$0xff]
    %v84 = vld [vmem:[#allocation5 + $0x30] sm:$0xff]
    %v85 = vld [vmem:[#allocation5 + $0x38] sm:$0xff]
    %v86 = vld [vmem:[#allocation5 + $0x40] sm:$0xff]
    %v87 = vld [vmem:[#allocation5 + $0x48] sm:$0xff]
    %v88 = vld [vmem:[#allocation5 + $0x50] sm:$0xff]
    %v89 = vld [vmem:[#allocation5 + $0x58] sm:$0xff]
    %v90 = vld [vmem:[#allocation5 + $0x60] sm:$0xff]
    %v91 = vld [vmem:[#allocation5 + $0x68] sm:$0xff]
    %v92 = vld [vmem:[#allocation5 + $0x70] sm:$0xff]
    %v93 = vld [vmem:[#allocation5 + $0x78] sm:$0xff]
    %v94 = vld [vmem:[#allocation5 + $0x80] sm:$0xff]
    %v95 = vld [vmem:[#allocation5 + $0x88] sm:$0xff]
    %v96 = vld [vmem:[#allocation5 + $0x90] sm:$0xff]
    %v97 = vld [vmem:[#allocation5 + $0x98] sm:$0xff]
    %v98 = vld [vmem:[#allocation5 + $0xa0] sm:$0xff]
    %v99 = vld [vmem:[#allocation5 + $0xa8] sm:$0xff]
    %v100 = vld [vmem:[#allocation5 + $0xb0] sm:$0xff]
    %v101 = vld [vmem:[#allocation5 + $0xb8] sm:$0xff]
    %v102 = vld [vmem:[#allocation5 + $0xc0] sm:$0xff]
    %v103 = vld [vmem:[#allocation5 + $0xc8] sm:$0xff]
    %v104 = vld [vmem:[#allocation5 + $0xd0] sm:$0xff]
    %v105 = vld [vmem:[#allocation5 + $0xd8] sm:$0xff]
    %v106 = vld [vmem:[#allocation5 + $0xe0] sm:$0xff]
    %v107 = vld [vmem:[#allocation5 + $0xe8] sm:$0xff]
    %v108 = vld [vmem:[#allocation5 + $0xf0] sm:$0xff]
    %v109 = vld [vmem:[#allocation5 + $0xf8] sm:$0xff]
    %v110 = vld [vmem:[#allocation5 + $0x100] sm:$0xff]
    %v111 = vld [vmem:[#allocation5 + $0x108] sm:$0xff]
    %v112 = vld [vmem:[#allocation5 + $0x110] sm:$0xff]
    %v113 = vld [vmem:[#allocation5 + $0x118] sm:$0xff]
    %v114 = vld [vmem:[#allocation5 + $0x120] sm:$0xff]
    %v115 = vld [vmem:[#allocation5 + $0x128] sm:$0xff]
    %v116 = vld [vmem:[#allocation5 + $0x130] sm:$0xff]
    %v117 = vld [vmem:[#allocation5 + $0x138] sm:$0xff]
    %v118 = vld [vmem:[#allocation5 + $0x140] sm:$0xff]
    %v119 = vld [vmem:[#allocation5 + $0x148] sm:$0xff]
    %v120 = vld [vmem:[#allocation5 + $0x150] sm:$0xff]
    %v121 = vld [vmem:[#allocation5 + $0x158] sm:$0xff]
    %v122 = vld [vmem:[#allocation5 + $0x160] sm:$0xff]
    %v123 = vld [vmem:[#allocation5 + $0x168] sm:$0xff]
    %v124 = vld [vmem:[#allocation5 + $0x170] sm:$0xff]
    %v125 = vld [vmem:[#allocation5 + $0x178] sm:$0xff]
    %v126 = vld [vmem:[#allocation5 + $0x180] sm:$0xff]
    %v127 = vld [vmem:[#allocation5 + $0x188] sm:$0xff]
    %v128 = vld [vmem:[#allocation5 + $0x190] sm:$0xff]
    %v129 = vld [vmem:[#allocation5 + $0x198] sm:$0xff]
    %v130 = vld [vmem:[#allocation5 + $0x1a0] sm:$0xff]
    %v131 = vld [vmem:[#allocation5 + $0x1a8] sm:$0xff]
    %v132 = vld [vmem:[#allocation5 + $0x1b0] sm:$0xff]
    %v133 = vld [vmem:[#allocation5 + $0x1b8] sm:$0xff]
    %v134 = vld [vmem:[#allocation5 + $0x1c0] sm:$0xff]
    %v135 = vld [vmem:[#allocation5 + $0x1c8] sm:$0xff]
    %v136 = vld [vmem:[#allocation5 + $0x1d0] sm:$0xff]
    %v137 = vld [vmem:[#allocation5 + $0x1d8] sm:$0xff]
    %v138 = vld [vmem:[#allocation5 + $0x1e0] sm:$0xff]
    %v139 = vld [vmem:[#allocation5 + $0x1e8] sm:$0xff]
    %v140 = vld [vmem:[#allocation5 + $0x1f0] sm:$0xff]
    %v141 = vld [vmem:[#allocation5 + $0x1f8] sm:$0xff]
    %v142 = vld [vmem:[#allocation5 + $0x200] sm:$0xff]
    %v143 = vld [vmem:[#allocation5 + $0x208] sm:$0xff]
    %v144 = vld [vmem:[#allocation5 + $0x210] sm:$0xff]
    %v145 = vld [vmem:[#allocation5 + $0x218] sm:$0xff]
    %v146 = vld [vmem:[#allocation5 + $0x220] sm:$0xff]
    %v147 = vld [vmem:[#allocation5 + $0x228] sm:$0xff]
    %v148 = vld [vmem:[#allocation5 + $0x230] sm:$0xff]
    %v149 = vld [vmem:[#allocation5 + $0x238] sm:$0xff]
    %v150 = vld [vmem:[#allocation5 + $0x240] sm:$0xff]
    %v151 = vld [vmem:[#allocation5 + $0x248] sm:$0xff]
    %v152 = vld [vmem:[#allocation5 + $0x250] sm:$0xff]
    %v153 = vld [vmem:[#allocation5 + $0x258] sm:$0xff]
    %v154 = vld [vmem:[#allocation5 + $0x260] sm:$0xff]
    %v155 = vld [vmem:[#allocation5 + $0x268] sm:$0xff]
    %v156 = vld [vmem:[#allocation5 + $0x270] sm:$0xff]
    %v157 = vld [vmem:[#allocation5 + $0x278] sm:$0xff]
    %v158 = vld [vmem:[#allocation5 + $0x280] sm:$0xff]
    %v159 = vld [vmem:[#allocation5 + $0x288] sm:$0xff]
    %v160 = vld [vmem:[#allocation5 + $0x290] sm:$0xff]
    %v161 = vld [vmem:[#allocation5 + $0x298] sm:$0xff]
    %v162 = vld [vmem:[#allocation5 + $0x2a0] sm:$0xff]
    %v163 = vld [vmem:[#allocation5 + $0x2a8] sm:$0xff]
    %v164 = vld [vmem:[#allocation5 + $0x2b0] sm:$0xff]
    %v165 = vld [vmem:[#allocation5 + $0x2b8] sm:$0xff]
    %v166 = vld [vmem:[#allocation5 + $0x2c0] sm:$0xff]
    %v167 = vld [vmem:[#allocation5 + $0x2c8] sm:$0xff]
    %v168 = vld [vmem:[#allocation5 + $0x2d0] sm:$0xff]
    %v169 = vld [vmem:[#allocation5 + $0x2d8] sm:$0xff]
    %v170 = vld [vmem:[#allocation5 + $0x2e0] sm:$0xff]
    %v171 = vld [vmem:[#allocation5 + $0x2e8] sm:$0xff]
    %v172 = vld [vmem:[#allocation5 + $0x2f0] sm:$0xff]
    %v173 = vld [vmem:[#allocation5 + $0x2f8] sm:$0xff]
    %v174 = vld [vmem:[#allocation5 + $0x300] sm:$0xff]
    %v175 = vld [vmem:[#allocation5 + $0x308] sm:$0xff]
    %v176 = vld [vmem:[#allocation5 + $0x310] sm:$0xff]
    %v177 = vld [vmem:[#allocation5 + $0x318] sm:$0xff]
    %v178 = vld [vmem:[#allocation5 + $0x320] sm:$0xff]
    %v179 = vld [vmem:[#allocation5 + $0x328] sm:$0xff]
    %v180 = vld [vmem:[#allocation5 + $0x330] sm:$0xff]
    %v181 = vld [vmem:[#allocation5 + $0x338] sm:$0xff]
    %v182 = vld [vmem:[#allocation5 + $0x340] sm:$0xff]
    %v183 = vld [vmem:[#allocation5 + $0x348] sm:$0xff]
    %v184 = vld [vmem:[#allocation5 + $0x350] sm:$0xff]
    %v185 = vld [vmem:[#allocation5 + $0x358] sm:$0xff]
    %v186 = vld [vmem:[#allocation5 + $0x360] sm:$0xff]
    %v187 = vld [vmem:[#allocation5 + $0x368] sm:$0xff]
    %v188 = vld [vmem:[#allocation5 + $0x370] sm:$0xff]
    %v189 = vld [vmem:[#allocation5 + $0x378] sm:$0xff]
    %v190 = vld [vmem:[#allocation5 + $0x380] sm:$0xff]
    %v191 = vld [vmem:[#allocation5 + $0x388] sm:$0xff]
    %v192 = vld [vmem:[#allocation5 + $0x390] sm:$0xff]
    %v193 = vld [vmem:[#allocation5 + $0x398] sm:$0xff]
    %v194 = vld [vmem:[#allocation5 + $0x3a0] sm:$0xff]
    %v195 = vld [vmem:[#allocation5 + $0x3a8] sm:$0xff]
    %v196 = vld [vmem:[#allocation5 + $0x3b0] sm:$0xff]
    %v197 = vld [vmem:[#allocation5 + $0x3b8] sm:$0xff]
    %v198 = vld [vmem:[#allocation5 + $0x3c0] sm:$0xff]
    %v199 = vld [vmem:[#allocation5 + $0x3c8] sm:$0xff]
    %v200 = vld [vmem:[#allocation5 + $0x3d0] sm:$0xff]
    %v201 = vld [vmem:[#allocation5 + $0x3d8] sm:$0xff]
    %v202 = vld [vmem:[#allocation5 + $0x3e0] sm:$0xff]
    %v203 = vld [vmem:[#allocation5 + $0x3e8] sm:$0xff]
    %v204 = vld [vmem:[#allocation5 + $0x3f0] sm:$0xff]
    %v205 = vld [vmem:[#allocation5 + $0x3f8] sm:$0xff]
    %v206 = vld [vmem:[#allocation5 + $0x400] sm:$0xff]
    %v207 = vld [vmem:[#allocation5 + $0x408] sm:$0xff]
    %v208 = vld [vmem:[#allocation5 + $0x410] sm:$0xff]
    %v209 = vld [vmem:[#allocation5 + $0x418] sm:$0xff]
    %v210 = vld [vmem:[#allocation5 + $0x420] sm:$0xff]
    %v211 = vld [vmem:[#allocation5 + $0x428] sm:$0xff]
    %v212 = vld [vmem:[#allocation5 + $0x430] sm:$0xff]
    %v213 = vld [vmem:[#allocation5 + $0x438] sm:$0xff]
    %v214 = vld [vmem:[#allocation5 + $0x440] sm:$0xff]
    %v215 = vld [vmem:[#allocation5 + $0x448] sm:$0xff]
    %v216 = vld [vmem:[#allocation5 + $0x450] sm:$0xff]
    %v217 = vld [vmem:[#allocation5 + $0x458] sm:$0xff]
    %v218 = vld [vmem:[#allocation5 + $0x460] sm:$0xff]
    %v219 = vld [vmem:[#allocation5 + $0x468] sm:$0xff]
    %v220 = vld [vmem:[#allocation5 + $0x470] sm:$0xff]
    %v221 = vld [vmem:[#allocation5 + $0x478] sm:$0xff]
    %v222 = vld [vmem:[#allocation5 + $0x480] sm:$0xff]
    %v223 = vld [vmem:[#allocation5 + $0x488] sm:$0xff]
    %v224 = vld [vmem:[#allocation5 + $0x490] sm:$0xff]
    %v225 = vld [vmem:[#allocation5 + $0x498] sm:$0xff]
    %v226 = vld [vmem:[#allocation5 + $0x4a0] sm:$0xff]
    %v227 = vld [vmem:[#allocation5 + $0x4a8] sm:$0xff]
    %v228 = vld [vmem:[#allocation5 + $0x4b0] sm:$0xff]
    %v229 = vld [vmem:[#allocation5 + $0x4b8] sm:$0xff]
    %v230 = vld [vmem:[#allocation5 + $0x4c0] sm:$0xff]
    %v231 = vld [vmem:[#allocation5 + $0x4c8] sm:$0xff]
    %v232 = vld [vmem:[#allocation5 + $0x4d0] sm:$0xff]
    %v233 = vld [vmem:[#allocation5 + $0x4d8] sm:$0xff]
    %v234 = vld [vmem:[#allocation5 + $0x4e0] sm:$0xff]
    %v235 = vld [vmem:[#allocation5 + $0x4e8] sm:$0xff]
    %v236 = vld [vmem:[#allocation5 + $0x4f0] sm:$0xff]
    %v237 = vld [vmem:[#allocation5 + $0x4f8] sm:$0xff]
    %v238 = vld [vmem:[#allocation5 + $0x500] sm:$0xff]
    %v239 = vld [vmem:[#allocation5 + $0x508] sm:$0xff]
    %v240 = vld [vmem:[#allocation5 + $0x510] sm:$0xff]
    %v241 = vld [vmem:[#allocation5 + $0x518] sm:$0xff]
    %v242 = vld [vmem:[#allocation5 + $0x520] sm:$0xff]
    %v243 = vld [vmem:[#allocation5 + $0x528] sm:$0xff]
    %v244 = vld [vmem:[#allocation5 + $0x530] sm:$0xff]
    %v245 = vld [vmem:[#allocation5 + $0x538] sm:$0xff]
    %v246 = vld [vmem:[#allocation5 + $0x540] sm:$0xff]
    %v247 = vld [vmem:[#allocation5 + $0x548] sm:$0xff]
    %v248 = vld [vmem:[#allocation5 + $0x550] sm:$0xff]
    %v249 = vld [vmem:[#allocation5 + $0x558] sm:$0xff]
    %v250 = vld [vmem:[#allocation5 + $0x560] sm:$0xff]
    %v251 = vld [vmem:[#allocation5 + $0x568] sm:$0xff]
    %v252 = vld [vmem:[#allocation5 + $0x570] sm:$0xff]
    %v253 = vld [vmem:[#allocation5 + $0x578] sm:$0xff]
    %v254 = vld [vmem:[#allocation5 + $0x580] sm:$0xff]
    %v255 = vld [vmem:[#allocation5 + $0x588] sm:$0xff]
    %v256 = vld [vmem:[#allocation5 + $0x590] sm:$0xff]
    %v257 = vld [vmem:[#allocation5 + $0x598] sm:$0xff]
    %v258 = vld [vmem:[#allocation5 + $0x5a0] sm:$0xff]
    %v259 = vld [vmem:[#allocation5 + $0x5a8] sm:$0xff]
    %v260 = vld [vmem:[#allocation5 + $0x5b0] sm:$0xff]
    %v261 = vld [vmem:[#allocation5 + $0x5b8] sm:$0xff]
    %v262 = vld [vmem:[#allocation5 + $0x5c0] sm:$0xff]
    %v263 = vld [vmem:[#allocation5 + $0x5c8] sm:$0xff]
    %v264 = vld [vmem:[#allocation5 + $0x5d0] sm:$0xff]
    %v265 = vld [vmem:[#allocation5 + $0x5d8] sm:$0xff]
    %v266 = vld [vmem:[#allocation5 + $0x5e0] sm:$0xff]
    %v267 = vld [vmem:[#allocation5 + $0x5e8] sm:$0xff]
    %v268 = vld [vmem:[#allocation5 + $0x5f0] sm:$0xff]
    %v269 = vld [vmem:[#allocation5 + $0x5f8] sm:$0xff]
    %v270 = vld [vmem:[#allocation5 + $0x600] sm:$0xff]
    %v271 = vld [vmem:[#allocation5 + $0x608] sm:$0xff]
    %v272 = vld [vmem:[#allocation5 + $0x610] sm:$0xff]
    %v273 = vld [vmem:[#allocation5 + $0x618] sm:$0xff]
    %v274 = vld [vmem:[#allocation5 + $0x620] sm:$0xff]
    %v275 = vld [vmem:[#allocation5 + $0x628] sm:$0xff]
    %v276 = vld [vmem:[#allocation5 + $0x630] sm:$0xff]
    %v277 = vld [vmem:[#allocation5 + $0x638] sm:$0xff]
    %v278 = vld [vmem:[#allocation5 + $0x640] sm:$0xff]
    %v279 = vld [vmem:[#allocation5 + $0x648] sm:$0xff]
    %v280 = vld [vmem:[#allocation5 + $0x650] sm:$0xff]
    %v281 = vld [vmem:[#allocation5 + $0x658] sm:$0xff]
    %v282 = vld [vmem:[#allocation5 + $0x660] sm:$0xff]
    %v283 = vld [vmem:[#allocation5 + $0x668] sm:$0xff]
    %v284 = vld [vmem:[#allocation5 + $0x670] sm:$0xff]
    %v285 = vld [vmem:[#allocation5 + $0x678] sm:$0xff]
    %v286 = vld [vmem:[#allocation5 + $0x680] sm:$0xff]
    %v287 = vld [vmem:[#allocation5 + $0x688] sm:$0xff]
    %v288 = vld [vmem:[#allocation5 + $0x690] sm:$0xff]
    %v289 = vld [vmem:[#allocation5 + $0x698] sm:$0xff]
    %v290 = vld [vmem:[#allocation5 + $0x6a0] sm:$0xff]
    %v291 = vld [vmem:[#allocation5 + $0x6a8] sm:$0xff]
    %v292 = vld [vmem:[#allocation5 + $0x6b0] sm:$0xff]
    %v293 = vld [vmem:[#allocation5 + $0x6b8] sm:$0xff]
    %v294 = vld [vmem:[#allocation5 + $0x6c0] sm:$0xff]
    %v295 = vld [vmem:[#allocation5 + $0x6c8] sm:$0xff]
    %v296 = vld [vmem:[#allocation5 + $0x6d0] sm:$0xff]
    %v297 = vld [vmem:[#allocation5 + $0x6d8] sm:$0xff]
    %v298 = vld [vmem:[#allocation5 + $0x6e0] sm:$0xff]
    %v299 = vld [vmem:[#allocation5 + $0x6e8] sm:$0xff]
    %v300 = vld [vmem:[#allocation5 + $0x6f0] sm:$0xff]
    %v301 = vld [vmem:[#allocation5 + $0x6f8] sm:$0xff]
    %v302 = vld [vmem:[#allocation5 + $0x700] sm:$0xff]
    %v303 = vld [vmem:[#allocation5 + $0x708] sm:$0xff]
    %v304 = vld [vmem:[#allocation5 + $0x710] sm:$0xff]
    %v305 = vld [vmem:[#allocation5 + $0x718] sm:$0xff]
    %v306 = vld [vmem:[#allocation5 + $0x720] sm:$0xff]
    %v307 = vld [vmem:[#allocation5 + $0x728] sm:$0xff]
    %v308 = vld [vmem:[#allocation5 + $0x730] sm:$0xff]
    %v309 = vld [vmem:[#allocation5 + $0x738] sm:$0xff]
    %v310 = vld [vmem:[#allocation5 + $0x740] sm:$0xff]
    %v311 = vld [vmem:[#allocation5 + $0x748] sm:$0xff]
    %v312 = vld [vmem:[#allocation5 + $0x750] sm:$0xff]
    %v313 = vld [vmem:[#allocation5 + $0x758] sm:$0xff]
    %v314 = vld [vmem:[#allocation5 + $0x760] sm:$0xff]
    %v315 = vld [vmem:[#allocation5 + $0x768] sm:$0xff]
    %v316 = vld [vmem:[#allocation5 + $0x770] sm:$0xff]
    %v317 = vld [vmem:[#allocation5 + $0x778] sm:$0xff]
    %v318 = vld [vmem:[#allocation5 + $0x780] sm:$0xff]
    %v319 = vld [vmem:[#allocation5 + $0x788] sm:$0xff]
    %v320 = vld [vmem:[#allocation5 + $0x790] sm:$0xff]
    %v321 = vld [vmem:[#allocation5 + $0x798] sm:$0xff]
    %v322 = vld [vmem:[#allocation5 + $0x7a0] sm:$0xff]
    %v323 = vld [vmem:[#allocation5 + $0x7a8] sm:$0xff]
    %v324 = vld [vmem:[#allocation5 + $0x7b0] sm:$0xff]
    %v325 = vld [vmem:[#allocation5 + $0x7b8] sm:$0xff]
    %v326 = vld [vmem:[#allocation5 + $0x7c0] sm:$0xff]
    %v327 = vld [vmem:[#allocation5 + $0x7c8] sm:$0xff]
    %v328 = vld [vmem:[#allocation5 + $0x7d0] sm:$0xff]
    %v329 = vld [vmem:[#allocation5 + $0x7d8] sm:$0xff]
    %v330 = vld [vmem:[#allocation5 + $0x7e0] sm:$0xff]
    %v331 = vld [vmem:[#allocation5 + $0x7e8] sm:$0xff]
    %v332 = vld [vmem:[#allocation5 + $0x7f0] sm:$0xff]
    %v333 = vld [vmem:[#allocation5 + $0x7f8] sm:$0xff]
    %v334 = vld [vmem:[#allocation7] sm:$0xff]
    %v591 = vunpack.c.l.b16 %v78
    %v592 = vunpack.c.h.b16 %v78
    %v593 = vunpack.c.l.b16 %v79
    %v594 = vunpack.c.h.b16 %v79
    %v595 = vunpack.c.l.b16 %v80
    %v596 = vunpack.c.h.b16 %v80
    %v597 = vunpack.c.l.b16 %v81
    %v598 = vunpack.c.h.b16 %v81
    %v599 = vunpack.c.l.b16 %v82
    %v600 = vunpack.c.h.b16 %v82
    %v601 = vunpack.c.l.b16 %v83
    %v602 = vunpack.c.h.b16 %v83
    %v603 = vunpack.c.l.b16 %v84
    %v604 = vunpack.c.h.b16 %v84
    %v605 = vunpack.c.l.b16 %v85
    %v606 = vunpack.c.h.b16 %v85
    %v607 = vunpack.c.l.b16 %v86
    %v608 = vunpack.c.h.b16 %v86
    %v609 = vunpack.c.l.b16 %v87
    %v610 = vunpack.c.h.b16 %v87
    %v611 = vunpack.c.l.b16 %v88
    %v612 = vunpack.c.h.b16 %v88
    %v613 = vunpack.c.l.b16 %v89
    %v614 = vunpack.c.h.b16 %v89
    %v615 = vunpack.c.l.b16 %v90
    %v616 = vunpack.c.h.b16 %v90
    %v617 = vunpack.c.l.b16 %v91
    %v618 = vunpack.c.h.b16 %v91
    %v619 = vunpack.c.l.b16 %v92
    %v620 = vunpack.c.h.b16 %v92
    %v621 = vunpack.c.l.b16 %v93
    %v622 = vunpack.c.h.b16 %v93
    %v623 = vunpack.c.l.b16 %v94
    %v624 = vunpack.c.h.b16 %v94
    %v625 = vunpack.c.l.b16 %v95
    %v626 = vunpack.c.h.b16 %v95
    %v627 = vunpack.c.l.b16 %v96
    %v628 = vunpack.c.h.b16 %v96
    %v629 = vunpack.c.l.b16 %v97
    %v630 = vunpack.c.h.b16 %v97
    %v631 = vunpack.c.l.b16 %v98
    %v632 = vunpack.c.h.b16 %v98
    %v633 = vunpack.c.l.b16 %v99
    %v634 = vunpack.c.h.b16 %v99
    %v635 = vunpack.c.l.b16 %v100
    %v636 = vunpack.c.h.b16 %v100
    %v637 = vunpack.c.l.b16 %v101
    %v638 = vunpack.c.h.b16 %v101
    %v639 = vunpack.c.l.b16 %v102
    %v640 = vunpack.c.h.b16 %v102
    %v641 = vunpack.c.l.b16 %v103
    %v642 = vunpack.c.h.b16 %v103
    %v643 = vunpack.c.l.b16 %v104
    %v644 = vunpack.c.h.b16 %v104
    %v645 = vunpack.c.l.b16 %v105
    %v646 = vunpack.c.h.b16 %v105
    %v647 = vunpack.c.l.b16 %v106
    %v648 = vunpack.c.h.b16 %v106
    %v649 = vunpack.c.l.b16 %v107
    %v650 = vunpack.c.h.b16 %v107
    %v651 = vunpack.c.l.b16 %v108
    %v652 = vunpack.c.h.b16 %v108
    %v653 = vunpack.c.l.b16 %v109
    %v654 = vunpack.c.h.b16 %v109
    %v655 = vunpack.c.l.b16 %v110
    %v656 = vunpack.c.h.b16 %v110
    %v657 = vunpack.c.l.b16 %v111
    %v658 = vunpack.c.h.b16 %v111
    %v659 = vunpack.c.l.b16 %v112
    %v660 = vunpack.c.h.b16 %v112
    %v661 = vunpack.c.l.b16 %v113
    %v662 = vunpack.c.h.b16 %v113
    %v663 = vunpack.c.l.b16 %v114
    %v664 = vunpack.c.h.b16 %v114
    %v665 = vunpack.c.l.b16 %v115
    %v666 = vunpack.c.h.b16 %v115
    %v667 = vunpack.c.l.b16 %v116
    %v668 = vunpack.c.h.b16 %v116
    %v669 = vunpack.c.l.b16 %v117
    %v670 = vunpack.c.h.b16 %v117
    %v671 = vunpack.c.l.b16 %v118
    %v672 = vunpack.c.h.b16 %v118
    %v673 = vunpack.c.l.b16 %v119
    %v674 = vunpack.c.h.b16 %v119
    %v675 = vunpack.c.l.b16 %v120
    %v676 = vunpack.c.h.b16 %v120
    %v677 = vunpack.c.l.b16 %v121
    %v678 = vunpack.c.h.b16 %v121
    %v679 = vunpack.c.l.b16 %v122
    %v680 = vunpack.c.h.b16 %v122
    %v681 = vunpack.c.l.b16 %v123
    %v682 = vunpack.c.h.b16 %v123
    %v683 = vunpack.c.l.b16 %v124
    %v684 = vunpack.c.h.b16 %v124
    %v685 = vunpack.c.l.b16 %v125
    %v686 = vunpack.c.h.b16 %v125
    %v687 = vunpack.c.l.b16 %v126
    %v688 = vunpack.c.h.b16 %v126
    %v689 = vunpack.c.l.b16 %v127
    %v690 = vunpack.c.h.b16 %v127
    %v691 = vunpack.c.l.b16 %v128
    %v692 = vunpack.c.h.b16 %v128
    %v693 = vunpack.c.l.b16 %v129
    %v694 = vunpack.c.h.b16 %v129
    %v695 = vunpack.c.l.b16 %v130
    %v696 = vunpack.c.h.b16 %v130
    %v697 = vunpack.c.l.b16 %v131
    %v698 = vunpack.c.h.b16 %v131
    %v699 = vunpack.c.l.b16 %v132
    %v700 = vunpack.c.h.b16 %v132
    %v701 = vunpack.c.l.b16 %v133
    %v702 = vunpack.c.h.b16 %v133
    %v703 = vunpack.c.l.b16 %v134
    %v704 = vunpack.c.h.b16 %v134
    %v705 = vunpack.c.l.b16 %v135
    %v706 = vunpack.c.h.b16 %v135
    %v707 = vunpack.c.l.b16 %v136
    %v708 = vunpack.c.h.b16 %v136
    %v709 = vunpack.c.l.b16 %v137
    %v710 = vunpack.c.h.b16 %v137
    %v711 = vunpack.c.l.b16 %v138
    %v712 = vunpack.c.h.b16 %v138
    %v713 = vunpack.c.l.b16 %v139
    %v714 = vunpack.c.h.b16 %v139
    %v715 = vunpack.c.l.b16 %v140
    %v716 = vunpack.c.h.b16 %v140
    %v717 = vunpack.c.l.b16 %v141
    %v718 = vunpack.c.h.b16 %v141
    %v719 = vunpack.c.l.b16 %v142
    %v720 = vunpack.c.h.b16 %v142
    %v721 = vunpack.c.l.b16 %v143
    %v722 = vunpack.c.h.b16 %v143
    %v723 = vunpack.c.l.b16 %v144
    %v724 = vunpack.c.h.b16 %v144
    %v725 = vunpack.c.l.b16 %v145
    %v726 = vunpack.c.h.b16 %v145
    %v727 = vunpack.c.l.b16 %v146
    %v728 = vunpack.c.h.b16 %v146
    %v729 = vunpack.c.l.b16 %v147
    %v730 = vunpack.c.h.b16 %v147
    %v731 = vunpack.c.l.b16 %v148
    %v732 = vunpack.c.h.b16 %v148
    %v733 = vunpack.c.l.b16 %v149
    %v734 = vunpack.c.h.b16 %v149
    %v735 = vunpack.c.l.b16 %v150
    %v736 = vunpack.c.h.b16 %v150
    %v737 = vunpack.c.l.b16 %v151
    %v738 = vunpack.c.h.b16 %v151
    %v739 = vunpack.c.l.b16 %v152
    %v740 = vunpack.c.h.b16 %v152
    %v741 = vunpack.c.l.b16 %v153
    %v742 = vunpack.c.h.b16 %v153
    %v743 = vunpack.c.l.b16 %v154
    %v744 = vunpack.c.h.b16 %v154
    %v745 = vunpack.c.l.b16 %v155
    %v746 = vunpack.c.h.b16 %v155
    %v747 = vunpack.c.l.b16 %v156
    %v748 = vunpack.c.h.b16 %v156
    %v749 = vunpack.c.l.b16 %v157
    %v750 = vunpack.c.h.b16 %v157
    %v751 = vunpack.c.l.b16 %v158
    %v752 = vunpack.c.h.b16 %v158
    %v753 = vunpack.c.l.b16 %v159
    %v754 = vunpack.c.h.b16 %v159
    %v755 = vunpack.c.l.b16 %v160
    %v756 = vunpack.c.h.b16 %v160
    %v757 = vunpack.c.l.b16 %v161
    %v758 = vunpack.c.h.b16 %v161
    %v759 = vunpack.c.l.b16 %v162
    %v760 = vunpack.c.h.b16 %v162
    %v761 = vunpack.c.l.b16 %v163
    %v762 = vunpack.c.h.b16 %v163
    %v763 = vunpack.c.l.b16 %v164
    %v764 = vunpack.c.h.b16 %v164
    %v765 = vunpack.c.l.b16 %v165
    %v766 = vunpack.c.h.b16 %v165
    %v767 = vunpack.c.l.b16 %v166
    %v768 = vunpack.c.h.b16 %v166
    %v769 = vunpack.c.l.b16 %v167
    %v770 = vunpack.c.h.b16 %v167
    %v771 = vunpack.c.l.b16 %v168
    %v772 = vunpack.c.h.b16 %v168
    %v773 = vunpack.c.l.b16 %v169
    %v774 = vunpack.c.h.b16 %v169
    %v775 = vunpack.c.l.b16 %v170
    %v776 = vunpack.c.h.b16 %v170
    %v777 = vunpack.c.l.b16 %v171
    %v778 = vunpack.c.h.b16 %v171
    %v779 = vunpack.c.l.b16 %v172
    %v780 = vunpack.c.h.b16 %v172
    %v781 = vunpack.c.l.b16 %v173
    %v782 = vunpack.c.h.b16 %v173
    %v783 = vunpack.c.l.b16 %v174
    %v784 = vunpack.c.h.b16 %v174
    %v785 = vunpack.c.l.b16 %v175
    %v786 = vunpack.c.h.b16 %v175
    %v787 = vunpack.c.l.b16 %v176
    %v788 = vunpack.c.h.b16 %v176
    %v789 = vunpack.c.l.b16 %v177
    %v790 = vunpack.c.h.b16 %v177
    %v791 = vunpack.c.l.b16 %v178
    %v792 = vunpack.c.h.b16 %v178
    %v793 = vunpack.c.l.b16 %v179
    %v794 = vunpack.c.h.b16 %v179
    %v795 = vunpack.c.l.b16 %v180
    %v796 = vunpack.c.h.b16 %v180
    %v797 = vunpack.c.l.b16 %v181
    %v798 = vunpack.c.h.b16 %v181
    %v799 = vunpack.c.l.b16 %v182
    %v800 = vunpack.c.h.b16 %v182
    %v801 = vunpack.c.l.b16 %v183
    %v802 = vunpack.c.h.b16 %v183
    %v803 = vunpack.c.l.b16 %v184
    %v804 = vunpack.c.h.b16 %v184
    %v805 = vunpack.c.l.b16 %v185
    %v806 = vunpack.c.h.b16 %v185
    %v807 = vunpack.c.l.b16 %v186
    %v808 = vunpack.c.h.b16 %v186
    %v809 = vunpack.c.l.b16 %v187
    %v810 = vunpack.c.h.b16 %v187
    %v811 = vunpack.c.l.b16 %v188
    %v812 = vunpack.c.h.b16 %v188
    %v813 = vunpack.c.l.b16 %v189
    %v814 = vunpack.c.h.b16 %v189
    %v815 = vunpack.c.l.b16 %v190
    %v816 = vunpack.c.h.b16 %v190
    %v817 = vunpack.c.l.b16 %v191
    %v818 = vunpack.c.h.b16 %v191
    %v819 = vunpack.c.l.b16 %v192
    %v820 = vunpack.c.h.b16 %v192
    %v821 = vunpack.c.l.b16 %v193
    %v822 = vunpack.c.h.b16 %v193
    %v823 = vunpack.c.l.b16 %v194
    %v824 = vunpack.c.h.b16 %v194
    %v825 = vunpack.c.l.b16 %v195
    %v826 = vunpack.c.h.b16 %v195
    %v827 = vunpack.c.l.b16 %v196
    %v828 = vunpack.c.h.b16 %v196
    %v829 = vunpack.c.l.b16 %v197
    %v830 = vunpack.c.h.b16 %v197
    %v831 = vunpack.c.l.b16 %v198
    %v832 = vunpack.c.h.b16 %v198
    %v833 = vunpack.c.l.b16 %v199
    %v834 = vunpack.c.h.b16 %v199
    %v835 = vunpack.c.l.b16 %v200
    %v836 = vunpack.c.h.b16 %v200
    %v837 = vunpack.c.l.b16 %v201
    %v838 = vunpack.c.h.b16 %v201
    %v839 = vunpack.c.l.b16 %v202
    %v840 = vunpack.c.h.b16 %v202
    %v841 = vunpack.c.l.b16 %v203
    %v842 = vunpack.c.h.b16 %v203
    %v843 = vunpack.c.l.b16 %v204
    %v844 = vunpack.c.h.b16 %v204
    %v845 = vunpack.c.l.b16 %v205
    %v846 = vunpack.c.h.b16 %v205
    %v847 = vunpack.c.l.b16 %v206
    %v848 = vunpack.c.h.b16 %v206
    %v849 = vunpack.c.l.b16 %v207
    %v850 = vunpack.c.h.b16 %v207
    %v851 = vunpack.c.l.b16 %v208
    %v852 = vunpack.c.h.b16 %v208
    %v853 = vunpack.c.l.b16 %v209
    %v854 = vunpack.c.h.b16 %v209
    %v855 = vunpack.c.l.b16 %v210
    %v856 = vunpack.c.h.b16 %v210
    %v857 = vunpack.c.l.b16 %v211
    %v858 = vunpack.c.h.b16 %v211
    %v859 = vunpack.c.l.b16 %v212
    %v860 = vunpack.c.h.b16 %v212
    %v861 = vunpack.c.l.b16 %v213
    %v862 = vunpack.c.h.b16 %v213
    %v863 = vunpack.c.l.b16 %v214
    %v864 = vunpack.c.h.b16 %v214
    %v865 = vunpack.c.l.b16 %v215
    %v866 = vunpack.c.h.b16 %v215
    %v867 = vunpack.c.l.b16 %v216
    %v868 = vunpack.c.h.b16 %v216
    %v869 = vunpack.c.l.b16 %v217
    %v870 = vunpack.c.h.b16 %v217
    %v871 = vunpack.c.l.b16 %v218
    %v872 = vunpack.c.h.b16 %v218
    %v873 = vunpack.c.l.b16 %v219
    %v874 = vunpack.c.h.b16 %v219
    %v875 = vunpack.c.l.b16 %v220
    %v876 = vunpack.c.h.b16 %v220
    %v877 = vunpack.c.l.b16 %v221
    %v878 = vunpack.c.h.b16 %v221
    %v879 = vunpack.c.l.b16 %v222
    %v880 = vunpack.c.h.b16 %v222
    %v881 = vunpack.c.l.b16 %v223
    %v882 = vunpack.c.h.b16 %v223
    %v883 = vunpack.c.l.b16 %v224
    %v884 = vunpack.c.h.b16 %v224
    %v885 = vunpack.c.l.b16 %v225
    %v886 = vunpack.c.h.b16 %v225
    %v887 = vunpack.c.l.b16 %v226
    %v888 = vunpack.c.h.b16 %v226
    %v889 = vunpack.c.l.b16 %v227
    %v890 = vunpack.c.h.b16 %v227
    %v891 = vunpack.c.l.b16 %v228
    %v892 = vunpack.c.h.b16 %v228
    %v893 = vunpack.c.l.b16 %v229
    %v894 = vunpack.c.h.b16 %v229
    %v895 = vunpack.c.l.b16 %v230
    %v896 = vunpack.c.h.b16 %v230
    %v897 = vunpack.c.l.b16 %v231
    %v898 = vunpack.c.h.b16 %v231
    %v899 = vunpack.c.l.b16 %v232
    %v900 = vunpack.c.h.b16 %v232
    %v901 = vunpack.c.l.b16 %v233
    %v902 = vunpack.c.h.b16 %v233
    %v903 = vunpack.c.l.b16 %v234
    %v904 = vunpack.c.h.b16 %v234
    %v905 = vunpack.c.l.b16 %v235
    %v906 = vunpack.c.h.b16 %v235
    %v907 = vunpack.c.l.b16 %v236
    %v908 = vunpack.c.h.b16 %v236
    %v909 = vunpack.c.l.b16 %v237
    %v910 = vunpack.c.h.b16 %v237
    %v911 = vunpack.c.l.b16 %v238
    %v912 = vunpack.c.h.b16 %v238
    %v913 = vunpack.c.l.b16 %v239
    %v914 = vunpack.c.h.b16 %v239
    %v915 = vunpack.c.l.b16 %v240
    %v916 = vunpack.c.h.b16 %v240
    %v917 = vunpack.c.l.b16 %v241
    %v918 = vunpack.c.h.b16 %v241
    %v919 = vunpack.c.l.b16 %v242
    %v920 = vunpack.c.h.b16 %v242
    %v921 = vunpack.c.l.b16 %v243
    %v922 = vunpack.c.h.b16 %v243
    %v923 = vunpack.c.l.b16 %v244
    %v924 = vunpack.c.h.b16 %v244
    %v925 = vunpack.c.l.b16 %v245
    %v926 = vunpack.c.h.b16 %v245
    %v927 = vunpack.c.l.b16 %v246
    %v928 = vunpack.c.h.b16 %v246
    %v929 = vunpack.c.l.b16 %v247
    %v930 = vunpack.c.h.b16 %v247
    %v931 = vunpack.c.l.b16 %v248
    %v932 = vunpack.c.h.b16 %v248
    %v933 = vunpack.c.l.b16 %v249
    %v934 = vunpack.c.h.b16 %v249
    %v935 = vunpack.c.l.b16 %v250
    %v936 = vunpack.c.h.b16 %v250
    %v937 = vunpack.c.l.b16 %v251
    %v938 = vunpack.c.h.b16 %v251
    %v939 = vunpack.c.l.b16 %v252
    %v940 = vunpack.c.h.b16 %v252
    %v941 = vunpack.c.l.b16 %v253
    %v942 = vunpack.c.h.b16 %v253
    %v943 = vunpack.c.l.b16 %v254
    %v944 = vunpack.c.h.b16 %v254
    %v945 = vunpack.c.l.b16 %v255
    %v946 = vunpack.c.h.b16 %v255
    %v947 = vunpack.c.l.b16 %v256
    %v948 = vunpack.c.h.b16 %v256
    %v949 = vunpack.c.l.b16 %v257
    %v950 = vunpack.c.h.b16 %v257
    %v951 = vunpack.c.l.b16 %v258
    %v952 = vunpack.c.h.b16 %v258
    %v953 = vunpack.c.l.b16 %v259
    %v954 = vunpack.c.h.b16 %v259
    %v955 = vunpack.c.l.b16 %v260
    %v956 = vunpack.c.h.b16 %v260
    %v957 = vunpack.c.l.b16 %v261
    %v958 = vunpack.c.h.b16 %v261
    %v959 = vunpack.c.l.b16 %v262
    %v960 = vunpack.c.h.b16 %v262
    %v961 = vunpack.c.l.b16 %v263
    %v962 = vunpack.c.h.b16 %v263
    %v963 = vunpack.c.l.b16 %v264
    %v964 = vunpack.c.h.b16 %v264
    %v965 = vunpack.c.l.b16 %v265
    %v966 = vunpack.c.h.b16 %v265
    %v967 = vunpack.c.l.b16 %v266
    %v968 = vunpack.c.h.b16 %v266
    %v969 = vunpack.c.l.b16 %v267
    %v970 = vunpack.c.h.b16 %v267
    %v971 = vunpack.c.l.b16 %v268
    %v972 = vunpack.c.h.b16 %v268
    %v973 = vunpack.c.l.b16 %v269
    %v974 = vunpack.c.h.b16 %v269
    %v975 = vunpack.c.l.b16 %v270
    %v976 = vunpack.c.h.b16 %v270
    %v977 = vunpack.c.l.b16 %v271
    %v978 = vunpack.c.h.b16 %v271
    %v979 = vunpack.c.l.b16 %v272
    %v980 = vunpack.c.h.b16 %v272
    %v981 = vunpack.c.l.b16 %v273
    %v982 = vunpack.c.h.b16 %v273
    %v983 = vunpack.c.l.b16 %v274
    %v984 = vunpack.c.h.b16 %v274
    %v985 = vunpack.c.l.b16 %v275
    %v986 = vunpack.c.h.b16 %v275
    %v987 = vunpack.c.l.b16 %v276
    %v988 = vunpack.c.h.b16 %v276
    %v989 = vunpack.c.l.b16 %v277
    %v990 = vunpack.c.h.b16 %v277
    %v991 = vunpack.c.l.b16 %v278
    %v992 = vunpack.c.h.b16 %v278
    %v993 = vunpack.c.l.b16 %v279
    %v994 = vunpack.c.h.b16 %v279
    %v995 = vunpack.c.l.b16 %v280
    %v996 = vunpack.c.h.b16 %v280
    %v997 = vunpack.c.l.b16 %v281
    %v998 = vunpack.c.h.b16 %v281
    %v999 = vunpack.c.l.b16 %v282
    %v1000 = vunpack.c.h.b16 %v282
    %v1001 = vunpack.c.l.b16 %v283
    %v1002 = vunpack.c.h.b16 %v283
    %v1003 = vunpack.c.l.b16 %v284
    %v1004 = vunpack.c.h.b16 %v284
    %v1005 = vunpack.c.l.b16 %v285
    %v1006 = vunpack.c.h.b16 %v285
    %v1007 = vunpack.c.l.b16 %v286
    %v1008 = vunpack.c.h.b16 %v286
    %v1009 = vunpack.c.l.b16 %v287
    %v1010 = vunpack.c.h.b16 %v287
    %v1011 = vunpack.c.l.b16 %v288
    %v1012 = vunpack.c.h.b16 %v288
    %v1013 = vunpack.c.l.b16 %v289
    %v1014 = vunpack.c.h.b16 %v289
    %v1015 = vunpack.c.l.b16 %v290
    %v1016 = vunpack.c.h.b16 %v290
    %v1017 = vunpack.c.l.b16 %v291
    %v1018 = vunpack.c.h.b16 %v291
    %v1019 = vunpack.c.l.b16 %v292
    %v1020 = vunpack.c.h.b16 %v292
    %v1021 = vunpack.c.l.b16 %v293
    %v1022 = vunpack.c.h.b16 %v293
    %v1023 = vunpack.c.l.b16 %v294
    %v1024 = vunpack.c.h.b16 %v294
    %v1025 = vunpack.c.l.b16 %v295
    %v1026 = vunpack.c.h.b16 %v295
    %v1027 = vunpack.c.l.b16 %v296
    %v1028 = vunpack.c.h.b16 %v296
    %v1029 = vunpack.c.l.b16 %v297
    %v1030 = vunpack.c.h.b16 %v297
    %v1031 = vunpack.c.l.b16 %v298
    %v1032 = vunpack.c.h.b16 %v298
    %v1033 = vunpack.c.l.b16 %v299
    %v1034 = vunpack.c.h.b16 %v299
    %v1035 = vunpack.c.l.b16 %v300
    %v1036 = vunpack.c.h.b16 %v300
    %v1037 = vunpack.c.l.b16 %v301
    %v1038 = vunpack.c.h.b16 %v301
    %v1039 = vunpack.c.l.b16 %v302
    %v1040 = vunpack.c.h.b16 %v302
    %v1041 = vunpack.c.l.b16 %v303
    %v1042 = vunpack.c.h.b16 %v303
    %v1043 = vunpack.c.l.b16 %v304
    %v1044 = vunpack.c.h.b16 %v304
    %v1045 = vunpack.c.l.b16 %v305
    %v1046 = vunpack.c.h.b16 %v305
    %v1047 = vunpack.c.l.b16 %v306
    %v1048 = vunpack.c.h.b16 %v306
    %v1049 = vunpack.c.l.b16 %v307
    %v1050 = vunpack.c.h.b16 %v307
    %v1051 = vunpack.c.l.b16 %v308
    %v1052 = vunpack.c.h.b16 %v308
    %v1053 = vunpack.c.l.b16 %v309
    %v1054 = vunpack.c.h.b16 %v309
    %v1055 = vunpack.c.l.b16 %v310
    %v1056 = vunpack.c.h.b16 %v310
    %v1057 = vunpack.c.l.b16 %v311
    %v1058 = vunpack.c.h.b16 %v311
    %v1059 = vunpack.c.l.b16 %v312
    %v1060 = vunpack.c.h.b16 %v312
    %v1061 = vunpack.c.l.b16 %v313
    %v1062 = vunpack.c.h.b16 %v313
    %v1063 = vunpack.c.l.b16 %v314
    %v1064 = vunpack.c.h.b16 %v314
    %v1065 = vunpack.c.l.b16 %v315
    %v1066 = vunpack.c.h.b16 %v315
    %v1067 = vunpack.c.l.b16 %v316
    %v1068 = vunpack.c.h.b16 %v316
    %v1069 = vunpack.c.l.b16 %v317
    %v1070 = vunpack.c.h.b16 %v317
    %v1071 = vunpack.c.l.b16 %v318
    %v1072 = vunpack.c.h.b16 %v318
    %v1073 = vunpack.c.l.b16 %v319
    %v1074 = vunpack.c.h.b16 %v319
    %v1075 = vunpack.c.l.b16 %v320
    %v1076 = vunpack.c.h.b16 %v320
    %v1077 = vunpack.c.l.b16 %v321
    %v1078 = vunpack.c.h.b16 %v321
    %v1079 = vunpack.c.l.b16 %v322
    %v1080 = vunpack.c.h.b16 %v322
    %v1081 = vunpack.c.l.b16 %v323
    %v1082 = vunpack.c.h.b16 %v323
    %v1083 = vunpack.c.l.b16 %v324
    %v1084 = vunpack.c.h.b16 %v324
    %v1085 = vunpack.c.l.b16 %v325
    %v1086 = vunpack.c.h.b16 %v325
    %v1087 = vunpack.c.l.b16 %v326
    %v1088 = vunpack.c.h.b16 %v326
    %v1089 = vunpack.c.l.b16 %v327
    %v1090 = vunpack.c.h.b16 %v327
    %v1091 = vunpack.c.l.b16 %v328
    %v1092 = vunpack.c.h.b16 %v328
    %v1093 = vunpack.c.l.b16 %v329
    %v1094 = vunpack.c.h.b16 %v329
    %v1095 = vunpack.c.l.b16 %v330
    %v1096 = vunpack.c.h.b16 %v330
    %v1097 = vunpack.c.l.b16 %v331
    %v1098 = vunpack.c.h.b16 %v331
    %v1099 = vunpack.c.l.b16 %v332
    %v1100 = vunpack.c.h.b16 %v332
    %v1101 = vunpack.c.l.b16 %v333
    %v1102 = vunpack.c.h.b16 %v333
    %v1103 = vpack.c.b16 %v599, %v591
    %v1104 = vpack.c.b16 %v600, %v592
    %v1105 = vpack.c.b16 %v601, %v593
    %v1106 = vpack.c.b16 %v602, %v594
    %v1107 = vpack.c.b16 %v603, %v595
    %v1108 = vpack.c.b16 %v604, %v596
    %v1109 = vpack.c.b16 %v605, %v597
    %v1110 = vpack.c.b16 %v606, %v598
    %v1111 = vpack.c.b16 %v615, %v607
    %v1112 = vpack.c.b16 %v616, %v608
    %v1113 = vpack.c.b16 %v617, %v609
    %v1114 = vpack.c.b16 %v618, %v610
    %v1115 = vpack.c.b16 %v619, %v611
    %v1116 = vpack.c.b16 %v620, %v612
    %v1117 = vpack.c.b16 %v621, %v613
    %v1118 = vpack.c.b16 %v622, %v614
    %v1119 = vpack.c.b16 %v631, %v623
    %v1120 = vpack.c.b16 %v632, %v624
    %v1121 = vpack.c.b16 %v633, %v625
    %v1122 = vpack.c.b16 %v634, %v626
    %v1123 = vpack.c.b16 %v635, %v627
    %v1124 = vpack.c.b16 %v636, %v628
    %v1125 = vpack.c.b16 %v637, %v629
    %v1126 = vpack.c.b16 %v638, %v630
    %v1127 = vpack.c.b16 %v647, %v639
    %v1128 = vpack.c.b16 %v648, %v640
    %v1129 = vpack.c.b16 %v649, %v641
    %v1130 = vpack.c.b16 %v650, %v642
    %v1131 = vpack.c.b16 %v651, %v643
    %v1132 = vpack.c.b16 %v652, %v644
    %v1133 = vpack.c.b16 %v653, %v645
    %v1134 = vpack.c.b16 %v654, %v646
    %v1135 = vpack.c.b16 %v663, %v655
    %v1136 = vpack.c.b16 %v664, %v656
    %v1137 = vpack.c.b16 %v665, %v657
    %v1138 = vpack.c.b16 %v666, %v658
    %v1139 = vpack.c.b16 %v667, %v659
    %v1140 = vpack.c.b16 %v668, %v660
    %v1141 = vpack.c.b16 %v669, %v661
    %v1142 = vpack.c.b16 %v670, %v662
    %v1143 = vpack.c.b16 %v679, %v671
    %v1144 = vpack.c.b16 %v680, %v672
    %v1145 = vpack.c.b16 %v681, %v673
    %v1146 = vpack.c.b16 %v682, %v674
    %v1147 = vpack.c.b16 %v683, %v675
    %v1148 = vpack.c.b16 %v684, %v676
    %v1149 = vpack.c.b16 %v685, %v677
    %v1150 = vpack.c.b16 %v686, %v678
    %v1151 = vpack.c.b16 %v695, %v687
    %v1152 = vpack.c.b16 %v696, %v688
    %v1153 = vpack.c.b16 %v697, %v689
    %v1154 = vpack.c.b16 %v698, %v690
    %v1155 = vpack.c.b16 %v699, %v691
    %v1156 = vpack.c.b16 %v700, %v692
    %v1157 = vpack.c.b16 %v701, %v693
    %v1158 = vpack.c.b16 %v702, %v694
    %v1159 = vpack.c.b16 %v711, %v703
    %v1160 = vpack.c.b16 %v712, %v704
    %v1161 = vpack.c.b16 %v713, %v705
    %v1162 = vpack.c.b16 %v714, %v706
    %v1163 = vpack.c.b16 %v715, %v707
    %v1164 = vpack.c.b16 %v716, %v708
    %v1165 = vpack.c.b16 %v717, %v709
    %v1166 = vpack.c.b16 %v718, %v710
    %v1167 = vpack.c.b16 %v727, %v719
    %v1168 = vpack.c.b16 %v728, %v720
    %v1169 = vpack.c.b16 %v729, %v721
    %v1170 = vpack.c.b16 %v730, %v722
    %v1171 = vpack.c.b16 %v731, %v723
    %v1172 = vpack.c.b16 %v732, %v724
    %v1173 = vpack.c.b16 %v733, %v725
    %v1174 = vpack.c.b16 %v734, %v726
    %v1175 = vpack.c.b16 %v743, %v735
    %v1176 = vpack.c.b16 %v744, %v736
    %v1177 = vpack.c.b16 %v745, %v737
    %v1178 = vpack.c.b16 %v746, %v738
    %v1179 = vpack.c.b16 %v747, %v739
    %v1180 = vpack.c.b16 %v748, %v740
    %v1181 = vpack.c.b16 %v749, %v741
    %v1182 = vpack.c.b16 %v750, %v742
    %v1183 = vpack.c.b16 %v759, %v751
    %v1184 = vpack.c.b16 %v760, %v752
    %v1185 = vpack.c.b16 %v761, %v753
    %v1186 = vpack.c.b16 %v762, %v754
    %v1187 = vpack.c.b16 %v763, %v755
    %v1188 = vpack.c.b16 %v764, %v756
    %v1189 = vpack.c.b16 %v765, %v757
    %v1190 = vpack.c.b16 %v766, %v758
    %v1191 = vpack.c.b16 %v775, %v767
    %v1192 = vpack.c.b16 %v776, %v768
    %v1193 = vpack.c.b16 %v777, %v769
    %v1194 = vpack.c.b16 %v778, %v770
    %v1195 = vpack.c.b16 %v779, %v771
    %v1196 = vpack.c.b16 %v780, %v772
    %v1197 = vpack.c.b16 %v781, %v773
    %v1198 = vpack.c.b16 %v782, %v774
    %v1199 = vpack.c.b16 %v791, %v783
    %v1200 = vpack.c.b16 %v792, %v784
    %v1201 = vpack.c.b16 %v793, %v785
    %v1202 = vpack.c.b16 %v794, %v786
    %v1203 = vpack.c.b16 %v795, %v787
    %v1204 = vpack.c.b16 %v796, %v788
    %v1205 = vpack.c.b16 %v797, %v789
    %v1206 = vpack.c.b16 %v798, %v790
    %v1207 = vpack.c.b16 %v807, %v799
    %v1208 = vpack.c.b16 %v808, %v800
    %v1209 = vpack.c.b16 %v809, %v801
    %v1210 = vpack.c.b16 %v810, %v802
    %v1211 = vpack.c.b16 %v811, %v803
    %v1212 = vpack.c.b16 %v812, %v804
    %v1213 = vpack.c.b16 %v813, %v805
    %v1214 = vpack.c.b16 %v814, %v806
    %v1215 = vpack.c.b16 %v823, %v815
    %v1216 = vpack.c.b16 %v824, %v816
    %v1217 = vpack.c.b16 %v825, %v817
    %v1218 = vpack.c.b16 %v826, %v818
    %v1219 = vpack.c.b16 %v827, %v819
    %v1220 = vpack.c.b16 %v828, %v820
    %v1221 = vpack.c.b16 %v829, %v821
    %v1222 = vpack.c.b16 %v830, %v822
    %v1223 = vpack.c.b16 %v839, %v831
    %v1224 = vpack.c.b16 %v840, %v832
    %v1225 = vpack.c.b16 %v841, %v833
    %v1226 = vpack.c.b16 %v842, %v834
    %v1227 = vpack.c.b16 %v843, %v835
    %v1228 = vpack.c.b16 %v844, %v836
    %v1229 = vpack.c.b16 %v845, %v837
    %v1230 = vpack.c.b16 %v846, %v838
    %v1231 = vpack.c.b16 %v855, %v847
    %v1232 = vpack.c.b16 %v856, %v848
    %v1233 = vpack.c.b16 %v857, %v849
    %v1234 = vpack.c.b16 %v858, %v850
    %v1235 = vpack.c.b16 %v859, %v851
    %v1236 = vpack.c.b16 %v860, %v852
    %v1237 = vpack.c.b16 %v861, %v853
    %v1238 = vpack.c.b16 %v862, %v854
    %v1239 = vpack.c.b16 %v871, %v863
    %v1240 = vpack.c.b16 %v872, %v864
    %v1241 = vpack.c.b16 %v873, %v865
    %v1242 = vpack.c.b16 %v874, %v866
    %v1243 = vpack.c.b16 %v875, %v867
    %v1244 = vpack.c.b16 %v876, %v868
    %v1245 = vpack.c.b16 %v877, %v869
    %v1246 = vpack.c.b16 %v878, %v870
    %v1247 = vpack.c.b16 %v887, %v879
    %v1248 = vpack.c.b16 %v888, %v880
    %v1249 = vpack.c.b16 %v889, %v881
    %v1250 = vpack.c.b16 %v890, %v882
    %v1251 = vpack.c.b16 %v891, %v883
    %v1252 = vpack.c.b16 %v892, %v884
    %v1253 = vpack.c.b16 %v893, %v885
    %v1254 = vpack.c.b16 %v894, %v886
    %v1255 = vpack.c.b16 %v903, %v895
    %v1256 = vpack.c.b16 %v904, %v896
    %v1257 = vpack.c.b16 %v905, %v897
    %v1258 = vpack.c.b16 %v906, %v898
    %v1259 = vpack.c.b16 %v907, %v899
    %v1260 = vpack.c.b16 %v908, %v900
    %v1261 = vpack.c.b16 %v909, %v901
    %v1262 = vpack.c.b16 %v910, %v902
    %v1263 = vpack.c.b16 %v919, %v911
    %v1264 = vpack.c.b16 %v920, %v912
    %v1265 = vpack.c.b16 %v921, %v913
    %v1266 = vpack.c.b16 %v922, %v914
    %v1267 = vpack.c.b16 %v923, %v915
    %v1268 = vpack.c.b16 %v924, %v916
    %v1269 = vpack.c.b16 %v925, %v917
    %v1270 = vpack.c.b16 %v926, %v918
    %v1271 = vpack.c.b16 %v935, %v927
    %v1272 = vpack.c.b16 %v936, %v928
    %v1273 = vpack.c.b16 %v937, %v929
    %v1274 = vpack.c.b16 %v938, %v930
    %v1275 = vpack.c.b16 %v939, %v931
    %v1276 = vpack.c.b16 %v940, %v932
    %v1277 = vpack.c.b16 %v941, %v933
    %v1278 = vpack.c.b16 %v942, %v934
    %v1279 = vpack.c.b16 %v951, %v943
    %v1280 = vpack.c.b16 %v952, %v944
    %v1281 = vpack.c.b16 %v953, %v945
    %v1282 = vpack.c.b16 %v954, %v946
    %v1283 = vpack.c.b16 %v955, %v947
    %v1284 = vpack.c.b16 %v956, %v948
    %v1285 = vpack.c.b16 %v957, %v949
    %v1286 = vpack.c.b16 %v958, %v950
    %v1287 = vpack.c.b16 %v967, %v959
    %v1288 = vpack.c.b16 %v968, %v960
    %v1289 = vpack.c.b16 %v969, %v961
    %v1290 = vpack.c.b16 %v970, %v962
    %v1291 = vpack.c.b16 %v971, %v963
    %v1292 = vpack.c.b16 %v972, %v964
    %v1293 = vpack.c.b16 %v973, %v965
    %v1294 = vpack.c.b16 %v974, %v966
    %v1295 = vpack.c.b16 %v983, %v975
    %v1296 = vpack.c.b16 %v984, %v976
    %v1297 = vpack.c.b16 %v985, %v977
    %v1298 = vpack.c.b16 %v986, %v978
    %v1299 = vpack.c.b16 %v987, %v979
    %v1300 = vpack.c.b16 %v988, %v980
    %v1301 = vpack.c.b16 %v989, %v981
    %v1302 = vpack.c.b16 %v990, %v982
    %v1303 = vpack.c.b16 %v999, %v991
    %v1304 = vpack.c.b16 %v1000, %v992
    %v1305 = vpack.c.b16 %v1001, %v993
    %v1306 = vpack.c.b16 %v1002, %v994
    %v1307 = vpack.c.b16 %v1003, %v995
    %v1308 = vpack.c.b16 %v1004, %v996
    %v1309 = vpack.c.b16 %v1005, %v997
    %v1310 = vpack.c.b16 %v1006, %v998
    %v1311 = vpack.c.b16 %v1015, %v1007
    %v1312 = vpack.c.b16 %v1016, %v1008
    %v1313 = vpack.c.b16 %v1017, %v1009
    %v1314 = vpack.c.b16 %v1018, %v1010
    %v1315 = vpack.c.b16 %v1019, %v1011
    %v1316 = vpack.c.b16 %v1020, %v1012
    %v1317 = vpack.c.b16 %v1021, %v1013
    %v1318 = vpack.c.b16 %v1022, %v1014
    %v1319 = vpack.c.b16 %v1031, %v1023
    %v1320 = vpack.c.b16 %v1032, %v1024
    %v1321 = vpack.c.b16 %v1033, %v1025
    %v1322 = vpack.c.b16 %v1034, %v1026
    %v1323 = vpack.c.b16 %v1035, %v1027
    %v1324 = vpack.c.b16 %v1036, %v1028
    %v1325 = vpack.c.b16 %v1037, %v1029
    %v1326 = vpack.c.b16 %v1038, %v1030
    %v1327 = vpack.c.b16 %v1047, %v1039
    %v1328 = vpack.c.b16 %v1048, %v1040
    %v1329 = vpack.c.b16 %v1049, %v1041
    %v1330 = vpack.c.b16 %v1050, %v1042
    %v1331 = vpack.c.b16 %v1051, %v1043
    %v1332 = vpack.c.b16 %v1052, %v1044
    %v1333 = vpack.c.b16 %v1053, %v1045
    %v1334 = vpack.c.b16 %v1054, %v1046
    %v1335 = vpack.c.b16 %v1063, %v1055
    %v1336 = vpack.c.b16 %v1064, %v1056
    %v1337 = vpack.c.b16 %v1065, %v1057
    %v1338 = vpack.c.b16 %v1066, %v1058
    %v1339 = vpack.c.b16 %v1067, %v1059
    %v1340 = vpack.c.b16 %v1068, %v1060
    %v1341 = vpack.c.b16 %v1069, %v1061
    %v1342 = vpack.c.b16 %v1070, %v1062
    %v1343 = vpack.c.b16 %v1079, %v1071
    %v1344 = vpack.c.b16 %v1080, %v1072
    %v1345 = vpack.c.b16 %v1081, %v1073
    %v1346 = vpack.c.b16 %v1082, %v1074
    %v1347 = vpack.c.b16 %v1083, %v1075
    %v1348 = vpack.c.b16 %v1084, %v1076
    %v1349 = vpack.c.b16 %v1085, %v1077
    %v1350 = vpack.c.b16 %v1086, %v1078
    %v1351 = vpack.c.b16 %v1095, %v1087
    %v1352 = vpack.c.b16 %v1096, %v1088
    %v1353 = vpack.c.b16 %v1097, %v1089
    %v1354 = vpack.c.b16 %v1098, %v1090
    %v1355 = vpack.c.b16 %v1099, %v1091
    %v1356 = vpack.c.b16 %v1100, %v1092
    %v1357 = vpack.c.b16 %v1101, %v1093
    %v1358 = vpack.c.b16 %v1102, %v1094
    %v1616 = vlaneseq
    %v1617 = vshrl.u32 %v1616, 7
    %v1618 = vsub.s32 0, %v1617
    %v1619 = vrot.slane %v334, %v1618
    %v1620 = vlaneseq
    %v1621 = vshrl.u32 %v1620, 7
    %v1622 = vsub.s32 1, %v1621
    %v1623 = vrot.slane %v334, %v1622
    %v1624 = vlaneseq
    %v1625 = vshrl.u32 %v1624, 7
    %v1626 = vsub.s32 2, %v1625
    %v1627 = vrot.slane %v334, %v1626
    %v1628 = vlaneseq
    %v1629 = vshrl.u32 %v1628, 7
    %v1630 = vsub.s32 3, %v1629
    %v1631 = vrot.slane %v334, %v1630
    %v1632 = vlaneseq
    %v1633 = vshrl.u32 %v1632, 7
    %v1634 = vsub.s32 4, %v1633
    %v1635 = vrot.slane %v334, %v1634
    %v1636 = vlaneseq
    %v1637 = vshrl.u32 %v1636, 7
    %v1638 = vsub.s32 5, %v1637
    %v1639 = vrot.slane %v334, %v1638
    %v1640 = vlaneseq
    %v1641 = vshrl.u32 %v1640, 7
    %v1642 = vsub.s32 6, %v1641
    %v1643 = vrot.slane %v334, %v1642
    %v1644 = vlaneseq
    %v1645 = vshrl.u32 %v1644, 7
    %v1646 = vsub.s32 7, %v1645
    %v1647 = vrot.slane %v334, %v1646
    %1656 = vmatprep.subr.bf16.mxu0 %v1160
    %1657 = vmatpush1.bf16.msra.mxu0 %v1159
    %1658 = vmatprep.subr.bf16.mxu0 %v1152
    %1659 = vmatpush1.bf16.msra.mxu0 %v1151
    %1660 = vmatprep.subr.bf16.mxu0 %v1144
    %1661 = vmatpush1.bf16.msra.mxu0 %v1143
    %1662 = vmatprep.subr.bf16.mxu0 %v1136
    %1663 = vmatpush1.bf16.msra.mxu0 %v1135
    %1664 = vmatprep.subr.bf16.mxu0 %v1128
    %1665 = vmatpush1.bf16.msra.mxu0 %v1127
    %1666 = vmatprep.subr.bf16.mxu0 %v1120
    %1667 = vmatpush1.bf16.msra.mxu0 %v1119
    %1668 = vmatprep.subr.bf16.mxu0 %v1112
    %1669 = vmatpush1.bf16.msra.mxu0 %v1111
    %1670 = vmatprep.subr.bf16.mxu0 %v1104
    %1671 = vmatpush1.bf16.msra.mxu0 %v1103
    %1672 = vmatprep.subr.bf16.mxu0 %v1224
    %1673 = vmatpush2.bf16.msra.mxu0 %v1223
    %1674 = vmatprep.subr.bf16.mxu0 %v1216
    %1675 = vmatpush2.bf16.msra.mxu0 %v1215
    %1676 = vmatprep.subr.bf16.mxu0 %v1208
    %1677 = vmatpush2.bf16.msra.mxu0 %v1207
    %1678 = vmatprep.subr.bf16.mxu0 %v1200
    %1679 = vmatpush2.bf16.msra.mxu0 %v1199
    %1680 = vmatprep.subr.bf16.mxu0 %v1192
    %1681 = vmatpush2.bf16.msra.mxu0 %v1191
    %1682 = vmatprep.subr.bf16.mxu0 %v1184
    %1683 = vmatpush2.bf16.msra.mxu0 %v1183
    %1684 = vmatprep.subr.bf16.mxu0 %v1176
    %1685 = vmatpush2.bf16.msra.mxu0 %v1175
    %1686 = vmatprep.subr.bf16.mxu0 %v1168
    %1687 = vmatpush2.bf16.msra.mxu0 %v1167
    %1688 = vmatprep.mubr.bf16.mxu0 %v75
    %1689 = vmatmul.mubr.bf16.gmra.mxu0 %v74
    %v1690 = vpop.f32.mrf.mxu0
    %v1691 = vadd.f32 %v1619, %v1690
    %v1692 = vpop.f32.mrf.mxu0
    %v1693 = vadd.f32 %v1623, %v1692
    %v1694 = vpop.f32.mrf.mxu0
    %v1695 = vpop.f32.mrf.mxu0
    %1696 = vdwg.mxu0
    %1697 = vmatprep.subr.bf16.mxu0 %v1288
    %1698 = vmatpush1.bf16.msra.mxu0 %v1287
    %1699 = vmatprep.subr.bf16.mxu0 %v1280
    %1700 = vmatpush1.bf16.msra.mxu0 %v1279
    %1701 = vmatprep.subr.bf16.mxu0 %v1272
    %1702 = vmatpush1.bf16.msra.mxu0 %v1271
    %1703 = vmatprep.subr.bf16.mxu0 %v1264
    %1704 = vmatpush1.bf16.msra.mxu0 %v1263
    %1705 = vmatprep.subr.bf16.mxu0 %v1256
    %1706 = vmatpush1.bf16.msra.mxu0 %v1255
    %1707 = vmatprep.subr.bf16.mxu0 %v1248
    %1708 = vmatpush1.bf16.msra.mxu0 %v1247
    %1709 = vmatprep.subr.bf16.mxu0 %v1240
    %1710 = vmatpush1.bf16.msra.mxu0 %v1239
    %1711 = vmatprep.subr.bf16.mxu0 %v1232
    %1712 = vmatpush1.bf16.msra.mxu0 %v1231
    %1713 = vmatprep.subr.bf16.mxu0 %v1352
    %1714 = vmatpush2.bf16.msra.mxu0 %v1351
    %1715 = vmatprep.subr.bf16.mxu0 %v1344
    %1716 = vmatpush2.bf16.msra.mxu0 %v1343
    %1717 = vmatprep.subr.bf16.mxu0 %v1336
    %1718 = vmatpush2.bf16.msra.mxu0 %v1335
    %1719 = vmatprep.subr.bf16.mxu0 %v1328
    %1720 = vmatpush2.bf16.msra.mxu0 %v1327
    %1721 = vmatprep.subr.bf16.mxu0 %v1320
    %1722 = vmatpush2.bf16.msra.mxu0 %v1319
    %1723 = vmatprep.subr.bf16.mxu0 %v1312
    %1724 = vmatpush2.bf16.msra.mxu0 %v1311
    %1725 = vmatprep.subr.bf16.mxu0 %v1304
    %1726 = vmatpush2.bf16.msra.mxu0 %v1303
    %1727 = vmatprep.subr.bf16.mxu0 %v1296
    %1728 = vmatpush2.bf16.msra.mxu0 %v1295
    %1729 = vmatprep.mubr.bf16.mxu0 %v77
    %1730 = vmatmul.mubr.bf16.gmra.mxu0 %v76
    %v1731 = vpop.f32.mrf.mxu0
    %v1732 = vadd.f32 %v1691, %v1731
    %v1733 = vpop.f32.mrf.mxu0
    %v1734 = vadd.f32 %v1693, %v1733
    %v1735 = vpop.f32.mrf.mxu0
    %v1736 = vpop.f32.mrf.mxu0
    %1737 = vdwg.mxu0
    %1738 = vmatprep.subr.bf16.mxu0 %v1162
    %1739 = vmatpush1.bf16.msra.mxu0 %v1161
    %1740 = vmatprep.subr.bf16.mxu0 %v1154
    %1741 = vmatpush1.bf16.msra.mxu0 %v1153
    %1742 = vmatprep.subr.bf16.mxu0 %v1146
    %1743 = vmatpush1.bf16.msra.mxu0 %v1145
    %1744 = vmatprep.subr.bf16.mxu0 %v1138
    %1745 = vmatpush1.bf16.msra.mxu0 %v1137
    %1746 = vmatprep.subr.bf16.mxu0 %v1130
    %1747 = vmatpush1.bf16.msra.mxu0 %v1129
    %1748 = vmatprep.subr.bf16.mxu0 %v1122
    %1749 = vmatpush1.bf16.msra.mxu0 %v1121
    %1750 = vmatprep.subr.bf16.mxu0 %v1114
    %1751 = vmatpush1.bf16.msra.mxu0 %v1113
    %1752 = vmatprep.subr.bf16.mxu0 %v1106
    %1753 = vmatpush1.bf16.msra.mxu0 %v1105
    %1754 = vmatprep.subr.bf16.mxu0 %v1226
    %1755 = vmatpush2.bf16.msra.mxu0 %v1225
    %1756 = vmatprep.subr.bf16.mxu0 %v1218
    %1757 = vmatpush2.bf16.msra.mxu0 %v1217
    %1758 = vmatprep.subr.bf16.mxu0 %v1210
    %1759 = vmatpush2.bf16.msra.mxu0 %v1209
    %1760 = vmatprep.subr.bf16.mxu0 %v1202
    %1761 = vmatpush2.bf16.msra.mxu0 %v1201
    %1762 = vmatprep.subr.bf16.mxu0 %v1194
    %1763 = vmatpush2.bf16.msra.mxu0 %v1193
    %1764 = vmatprep.subr.bf16.mxu0 %v1186
    %1765 = vmatpush2.bf16.msra.mxu0 %v1185
    %1766 = vmatprep.subr.bf16.mxu0 %v1178
    %1767 = vmatpush2.bf16.msra.mxu0 %v1177
    %1768 = vmatprep.subr.bf16.mxu0 %v1170
    %1769 = vmatpush2.bf16.msra.mxu0 %v1169
    %1770 = vmatprep.mubr.bf16.mxu0 %v75
    %1771 = vmatmul.mubr.bf16.gmra.mxu0 %v74
    %v1772 = vpop.f32.mrf.mxu0
    %v1773 = vadd.f32 %v1627, %v1772
    %v1774 = vpop.f32.mrf.mxu0
    %v1775 = vadd.f32 %v1631, %v1774
    %v1776 = vpop.f32.mrf.mxu0
    %v1777 = vpop.f32.mrf.mxu0
    %1778 = vdwg.mxu0
    %1779 = vmatprep.subr.bf16.mxu0 %v1290
    %1780 = vmatpush1.bf16.msra.mxu0 %v1289
    %1781 = vmatprep.subr.bf16.mxu0 %v1282
    %1782 = vmatpush1.bf16.msra.mxu0 %v1281
    %1783 = vmatprep.subr.bf16.mxu0 %v1274
    %1784 = vmatpush1.bf16.msra.mxu0 %v1273
    %1785 = vmatprep.subr.bf16.mxu0 %v1266
    %1786 = vmatpush1.bf16.msra.mxu0 %v1265
    %1787 = vmatprep.subr.bf16.mxu0 %v1258
    %1788 = vmatpush1.bf16.msra.mxu0 %v1257
    %1789 = vmatprep.subr.bf16.mxu0 %v1250
    %1790 = vmatpush1.bf16.msra.mxu0 %v1249
    %1791 = vmatprep.subr.bf16.mxu0 %v1242
    %1792 = vmatpush1.bf16.msra.mxu0 %v1241
    %1793 = vmatprep.subr.bf16.mxu0 %v1234
    %1794 = vmatpush1.bf16.msra.mxu0 %v1233
    %1795 = vmatprep.subr.bf16.mxu0 %v1354
    %1796 = vmatpush2.bf16.msra.mxu0 %v1353
    %1797 = vmatprep.subr.bf16.mxu0 %v1346
    %1798 = vmatpush2.bf16.msra.mxu0 %v1345
    %1799 = vmatprep.subr.bf16.mxu0 %v1338
    %1800 = vmatpush2.bf16.msra.mxu0 %v1337
    %1801 = vmatprep.subr.bf16.mxu0 %v1330
    %1802 = vmatpush2.bf16.msra.mxu0 %v1329
    %1803 = vmatprep.subr.bf16.mxu0 %v1322
    %1804 = vmatpush2.bf16.msra.mxu0 %v1321
    %1805 = vmatprep.subr.bf16.mxu0 %v1314
    %1806 = vmatpush2.bf16.msra.mxu0 %v1313
    %1807 = vmatprep.subr.bf16.mxu0 %v1306
    %1808 = vmatpush2.bf16.msra.mxu0 %v1305
    %1809 = vmatprep.subr.bf16.mxu0 %v1298
    %1810 = vmatpush2.bf16.msra.mxu0 %v1297
    %1811 = vmatprep.mubr.bf16.mxu0 %v77
    %1812 = vmatmul.mubr.bf16.gmra.mxu0 %v76
    %v1813 = vpop.f32.mrf.mxu0
    %v1814 = vadd.f32 %v1773, %v1813
    %v1815 = vpop.f32.mrf.mxu0
    %v1816 = vadd.f32 %v1775, %v1815
    %v1817 = vpop.f32.mrf.mxu0
    %v1818 = vpop.f32.mrf.mxu0
    %1819 = vdwg.mxu0
    %1820 = vmatprep.subr.bf16.mxu0 %v1164
    %1821 = vmatpush1.bf16.msra.mxu0 %v1163
    %1822 = vmatprep.subr.bf16.mxu0 %v1156
    %1823 = vmatpush1.bf16.msra.mxu0 %v1155
    %1824 = vmatprep.subr.bf16.mxu0 %v1148
    %1825 = vmatpush1.bf16.msra.mxu0 %v1147
    %1826 = vmatprep.subr.bf16.mxu0 %v1140
    %1827 = vmatpush1.bf16.msra.mxu0 %v1139
    %1828 = vmatprep.subr.bf16.mxu0 %v1132
    %1829 = vmatpush1.bf16.msra.mxu0 %v1131
    %1830 = vmatprep.subr.bf16.mxu0 %v1124
    %1831 = vmatpush1.bf16.msra.mxu0 %v1123
    %1832 = vmatprep.subr.bf16.mxu0 %v1116
    %1833 = vmatpush1.bf16.msra.mxu0 %v1115
    %1834 = vmatprep.subr.bf16.mxu0 %v1108
    %1835 = vmatpush1.bf16.msra.mxu0 %v1107
    %1836 = vmatprep.subr.bf16.mxu0 %v1228
    %1837 = vmatpush2.bf16.msra.mxu0 %v1227
    %1838 = vmatprep.subr.bf16.mxu0 %v1220
    %1839 = vmatpush2.bf16.msra.mxu0 %v1219
    %1840 = vmatprep.subr.bf16.mxu0 %v1212
    %1841 = vmatpush2.bf16.msra.mxu0 %v1211
    %1842 = vmatprep.subr.bf16.mxu0 %v1204
    %1843 = vmatpush2.bf16.msra.mxu0 %v1203
    %1844 = vmatprep.subr.bf16.mxu0 %v1196
    %1845 = vmatpush2.bf16.msra.mxu0 %v1195
    %1846 = vmatprep.subr.bf16.mxu0 %v1188
    %1847 = vmatpush2.bf16.msra.mxu0 %v1187
    %1848 = vmatprep.subr.bf16.mxu0 %v1180
    %1849 = vmatpush2.bf16.msra.mxu0 %v1179
    %1850 = vmatprep.subr.bf16.mxu0 %v1172
    %1851 = vmatpush2.bf16.msra.mxu0 %v1171
    %1852 = vmatprep.mubr.bf16.mxu0 %v75
    %1853 = vmatmul.mubr.bf16.gmra.mxu0 %v74
    %v1854 = vpop.f32.mrf.mxu0
    %v1855 = vadd.f32 %v1635, %v1854
    %v1856 = vpop.f32.mrf.mxu0
    %v1857 = vadd.f32 %v1639, %v1856
    %v1858 = vpop.f32.mrf.mxu0
    %v1859 = vpop.f32.mrf.mxu0
    %1860 = vdwg.mxu0
    %1861 = vmatprep.subr.bf16.mxu0 %v1292
    %1862 = vmatpush1.bf16.msra.mxu0 %v1291
    %1863 = vmatprep.subr.bf16.mxu0 %v1284
    %1864 = vmatpush1.bf16.msra.mxu0 %v1283
    %1865 = vmatprep.subr.bf16.mxu0 %v1276
    %1866 = vmatpush1.bf16.msra.mxu0 %v1275
    %1867 = vmatprep.subr.bf16.mxu0 %v1268
    %1868 = vmatpush1.bf16.msra.mxu0 %v1267
    %1869 = vmatprep.subr.bf16.mxu0 %v1260
    %1870 = vmatpush1.bf16.msra.mxu0 %v1259
    %1871 = vmatprep.subr.bf16.mxu0 %v1252
    %1872 = vmatpush1.bf16.msra.mxu0 %v1251
    %1873 = vmatprep.subr.bf16.mxu0 %v1244
    %1874 = vmatpush1.bf16.msra.mxu0 %v1243
    %1875 = vmatprep.subr.bf16.mxu0 %v1236
    %1876 = vmatpush1.bf16.msra.mxu0 %v1235
    %1877 = vmatprep.subr.bf16.mxu0 %v1356
    %1878 = vmatpush2.bf16.msra.mxu0 %v1355
    %1879 = vmatprep.subr.bf16.mxu0 %v1348
    %1880 = vmatpush2.bf16.msra.mxu0 %v1347
    %1881 = vmatprep.subr.bf16.mxu0 %v1340
    %1882 = vmatpush2.bf16.msra.mxu0 %v1339
    %1883 = vmatprep.subr.bf16.mxu0 %v1332
    %1884 = vmatpush2.bf16.msra.mxu0 %v1331
    %1885 = vmatprep.subr.bf16.mxu0 %v1324
    %1886 = vmatpush2.bf16.msra.mxu0 %v1323
    %1887 = vmatprep.subr.bf16.mxu0 %v1316
    %1888 = vmatpush2.bf16.msra.mxu0 %v1315
    %1889 = vmatprep.subr.bf16.mxu0 %v1308
    %1890 = vmatpush2.bf16.msra.mxu0 %v1307
    %1891 = vmatprep.subr.bf16.mxu0 %v1300
    %1892 = vmatpush2.bf16.msra.mxu0 %v1299
    %1893 = vmatprep.mubr.bf16.mxu0 %v77
    %1894 = vmatmul.mubr.bf16.gmra.mxu0 %v76
    %v1895 = vpop.f32.mrf.mxu0
    %v1896 = vadd.f32 %v1855, %v1895
    %v1897 = vpop.f32.mrf.mxu0
    %v1898 = vadd.f32 %v1857, %v1897
    %v1899 = vpop.f32.mrf.mxu0
    %v1900 = vpop.f32.mrf.mxu0
    %1901 = vdwg.mxu0
    %1902 = vmatprep.subr.bf16.mxu0 %v1166
    %1903 = vmatpush1.bf16.msra.mxu0 %v1165
    %1904 = vmatprep.subr.bf16.mxu0 %v1158
    %1905 = vmatpush1.bf16.msra.mxu0 %v1157
    %1906 = vmatprep.subr.bf16.mxu0 %v1150
    %1907 = vmatpush1.bf16.msra.mxu0 %v1149
    %1908 = vmatprep.subr.bf16.mxu0 %v1142
    %1909 = vmatpush1.bf16.msra.mxu0 %v1141
    %1910 = vmatprep.subr.bf16.mxu0 %v1134
    %1911 = vmatpush1.bf16.msra.mxu0 %v1133
    %1912 = vmatprep.subr.bf16.mxu0 %v1126
    %1913 = vmatpush1.bf16.msra.mxu0 %v1125
    %1914 = vmatprep.subr.bf16.mxu0 %v1118
    %1915 = vmatpush1.bf16.msra.mxu0 %v1117
    %1916 = vmatprep.subr.bf16.mxu0 %v1110
    %1917 = vmatpush1.bf16.msra.mxu0 %v1109
    %1918 = vmatprep.subr.bf16.mxu0 %v1230
    %1919 = vmatpush2.bf16.msra.mxu0 %v1229
    %1920 = vmatprep.subr.bf16.mxu0 %v1222
    %1921 = vmatpush2.bf16.msra.mxu0 %v1221
    %1922 = vmatprep.subr.bf16.mxu0 %v1214
    %1923 = vmatpush2.bf16.msra.mxu0 %v1213
    %1924 = vmatprep.subr.bf16.mxu0 %v1206
    %1925 = vmatpush2.bf16.msra.mxu0 %v1205
    %1926 = vmatprep.subr.bf16.mxu0 %v1198
    %1927 = vmatpush2.bf16.msra.mxu0 %v1197
    %1928 = vmatprep.subr.bf16.mxu0 %v1190
    %1929 = vmatpush2.bf16.msra.mxu0 %v1189
    %1930 = vmatprep.subr.bf16.mxu0 %v1182
    %1931 = vmatpush2.bf16.msra.mxu0 %v1181
    %1932 = vmatprep.subr.bf16.mxu0 %v1174
    %1933 = vmatpush2.bf16.msra.mxu0 %v1173
    %1934 = vmatprep.mubr.bf16.mxu0 %v75
    %1935 = vmatmul.mubr.bf16.gmra.mxu0 %v74
    %v1936 = vpop.f32.mrf.mxu0
    %v1937 = vadd.f32 %v1643, %v1936
    %v1938 = vpop.f32.mrf.mxu0
    %v1939 = vadd.f32 %v1647, %v1938
    %v1940 = vpop.f32.mrf.mxu0
    %v1941 = vpop.f32.mrf.mxu0
    %1942 = vdwg.mxu0
    %1943 = vmatprep.subr.bf16.mxu0 %v1294
    %1944 = vmatpush1.bf16.msra.mxu0 %v1293
    %1945 = vmatprep.subr.bf16.mxu0 %v1286
    %1946 = vmatpush1.bf16.msra.mxu0 %v1285
    %1947 = vmatprep.subr.bf16.mxu0 %v1278
    %1948 = vmatpush1.bf16.msra.mxu0 %v1277
    %1949 = vmatprep.subr.bf16.mxu0 %v1270
    %1950 = vmatpush1.bf16.msra.mxu0 %v1269
    %1951 = vmatprep.subr.bf16.mxu0 %v1262
    %1952 = vmatpush1.bf16.msra.mxu0 %v1261
    %1953 = vmatprep.subr.bf16.mxu0 %v1254
    %1954 = vmatpush1.bf16.msra.mxu0 %v1253
    %1955 = vmatprep.subr.bf16.mxu0 %v1246
    %1956 = vmatpush1.bf16.msra.mxu0 %v1245
    %1957 = vmatprep.subr.bf16.mxu0 %v1238
    %1958 = vmatpush1.bf16.msra.mxu0 %v1237
    %1959 = vmatprep.subr.bf16.mxu0 %v1358
    %1960 = vmatpush2.bf16.msra.mxu0 %v1357
    %1961 = vmatprep.subr.bf16.mxu0 %v1350
    %1962 = vmatpush2.bf16.msra.mxu0 %v1349
    %1963 = vmatprep.subr.bf16.mxu0 %v1342
    %1964 = vmatpush2.bf16.msra.mxu0 %v1341
    %1965 = vmatprep.subr.bf16.mxu0 %v1334
    %1966 = vmatpush2.bf16.msra.mxu0 %v1333
    %1967 = vmatprep.subr.bf16.mxu0 %v1326
    %1968 = vmatpush2.bf16.msra.mxu0 %v1325
    %1969 = vmatprep.subr.bf16.mxu0 %v1318
    %1970 = vmatpush2.bf16.msra.mxu0 %v1317
    %1971 = vmatprep.subr.bf16.mxu0 %v1310
    %1972 = vmatpush2.bf16.msra.mxu0 %v1309
    %1973 = vmatprep.subr.bf16.mxu0 %v1302
    %1974 = vmatpush2.bf16.msra.mxu0 %v1301
    %1975 = vmatprep.mubr.bf16.mxu0 %v77
    %1976 = vmatmul.mubr.bf16.gmra.mxu0 %v76
    %v1977 = vpop.f32.mrf.mxu0
    %v1978 = vadd.f32 %v1937, %v1977
    %v1979 = vpop.f32.mrf.mxu0
    %v1980 = vadd.f32 %v1939, %v1979
    %v1981 = vpop.f32.mrf.mxu0
    %v1982 = vpop.f32.mrf.mxu0
    %1983 = vdwg.mxu0
    %v1992 = vcombine.low %v1732, %v1734
    %v1993 = vcombine.low %v1814, %v1816
    %v1994 = vcombine.low %v1896, %v1898
    %v1995 = vcombine.low %v1978, %v1980
    %v1997 = vunpack.c.l.s4 1966171168
    %v1998 = vunpack.c.0.s8 %v1997
    %v1999 = vlaneseq
    %v2000 = vshrl.u32 %v1999, 7
    %v2001 = vsub.s32 %v1998, %v2000
    %v2002 = vrot.slane %v1992, %v2001
    %v2004 = vunpack.c.l.s4 1966171168
    %v2005 = vunpack.c.0.s8 %v2004
    %v2006 = vlaneseq
    %v2007 = vshrl.u32 %v2006, 7
    %v2008 = vsub.s32 %v2005, %v2007
    %v2009 = vrot.slane %v1993, %v2008
    %v2011 = vunpack.c.l.s4 1966171168
    %v2012 = vunpack.c.0.s8 %v2011
    %v2013 = vlaneseq
    %v2014 = vshrl.u32 %v2013, 7
    %v2015 = vsub.s32 %v2012, %v2014
    %v2016 = vrot.slane %v1994, %v2015
    %v2018 = vunpack.c.l.s4 1966171168
    %v2019 = vunpack.c.0.s8 %v2018
    %v2020 = vlaneseq
    %v2021 = vshrl.u32 %v2020, 7
    %v2022 = vsub.s32 %v2019, %v2021
    %v2023 = vrot.slane %v1995, %v2022
    %v2024 = vcombine.low %v2002, %v2009
    %v2025 = vcombine.low %v2016, %v2023
    %v2027 = vunpack.c.l.s4 1966171168
    %v2028 = vunpack.c.0.s8 %v2027
    %v2029 = vlaneseq
    %v2030 = vshrl.u32 %v2029, 7
    %v2031 = vsub.s32 %v2028, %v2030
    %v2032 = vrot.slane %v2024, %v2031
    %v2034 = vunpack.c.l.s4 1966171168
    %v2035 = vunpack.c.0.s8 %v2034
    %v2036 = vlaneseq
    %v2037 = vshrl.u32 %v2036, 7
    %v2038 = vsub.s32 %v2035, %v2037
    %v2039 = vrot.slane %v2025, %v2038
    %v2040 = vcombine.low %v2032, %v2039
    %2042 = vst [vmem:[#allocation8] sm:$0xff] %v2040
    // Predicated region
    $region26: #{tpu_custom_call.1} parent=1 // pred_check
      _
    $region27: #{tpu_custom_call.1} parent=1 // pred_check_branch
      %2044 = sbr.rel (0) target = $region29
    $region28: #{tpu_custom_call.1} parent=1 // pred_region
      %s2046 = ssub.s32 128, 128
      %2047 = vsyncadd [#allocation4], %s2046
      %s2049 = sshll.u32 [#allocation8], 4
      %s2050 = int_to_ptr.vmem [resolvable:$true] %s2049
      %2052 = dma.vmem_to_hbm [thread:$0]  %s2050, 128, %s3, [#allocation4]
    $region29: #{tpu_custom_call.1} parent=1 // pred_fallthru
      _
    // Predicated region
    $region30: #{tpu_custom_call.1} parent=1 // pred_check
      _
    $region31: #{tpu_custom_call.1} parent=1 // pred_check_branch
      %2054 = sbr.rel (0) target = $region33
    $region32: #{tpu_custom_call.1} parent=1 // pred_region
      %2055 = dma.done [#allocation4], 128
    $region33: #{tpu_custom_call.1} parent=1 // pred_fallthru
      _
    %2056 = vsyncpa [#allocation3], 1
    %2057 = vsyncpa [#allocation6], 1
    %2058 = vsyncpa [#allocation4], 1

</llo_original>
